<compile_context>
chip_gen: v7x
topology: tpu7x:2x2x1
jax: 0.10.0
libtpu: 0.0.40
codegen_flags: <defaults>
</compile_context>

<pallas_src>
import jax
import jax.numpy as jnp
from jax import lax
from jax.experimental import pallas as pl
from jax.experimental.pallas import tpu as pltpu

# ---- model dimensions (small, consistent with the module) -------------------
V = 50             # vocab size
E = 32             # embedding_dim
H = 32             # hidden_dim
T = 8              # tags_size (6 content tags + START + STOP)
S = 8              # sequence length
START_IDX = T - 2  # get_tags() puts START at tags_size-2
STOP_IDX = T - 1   # and STOP at tags_size-1

E2 = 2 * E         # [emb | emb_reversed] input width
H2 = 2 * H         # [fwd | bwd] combined hidden width
G4 = 4 * H2        # all-gate packed width (gate order i, f, o, g) = 256
SH = S // 2        # even/odd step split in the Viterbi DP


# =============================================================================
# Fused kernel: BiLSTM recurrence + hidden2tag + Viterbi forward DP
# =============================================================================
def bilstm_crf_kernel(xin_ref, w_ref, b_ref, hc0_ref, wout_ref, bout_ref,
                      transp_ref, tstop_ref,
                      bpa_ref, bpb_ref, term_ref, hall_ref):
    f32 = jnp.float32

    # ---- hoisted input projection: ONE matmul for all gates, both dirs ------
    # xin row t = [emb[t] | emb[S-1-t]];  w_ref[0:2E] = per-gate blockdiag(Wxf,Wxb)
    xin = xin_ref[...]                                               # (S, 2E)
    x_all = (jnp.dot(xin, w_ref[0:E2, :], preferred_element_type=f32)
             + b_ref[...])                                           # (S, 256)

    wh_cat = w_ref[E2:E2 + H2, :]                                    # (2H, 256), constant RHS

    # ---- recurrence: one 256-wide matmul + 1 sigmoid + 2 tanh per step ------
    h = hc0_ref[0:1, :]                                              # (1, 2H) [fwd|bwd]
    c = hc0_ref[1:2, :]
    for t in range(S):
        z = x_all[t:t + 1, :] + jnp.dot(h, wh_cat,
                                        preferred_element_type=f32)  # (1, 256)
        sig = jax.nn.sigmoid(z[:, 0:3 * H2])                         # i|f|o lanes
        g_act = jnp.tanh(z[:, 3 * H2:4 * H2])                        # g lanes
        i_g = sig[:, 0:H2]
        f_g = sig[:, H2:2 * H2]
        o_g = sig[:, 2 * H2:3 * H2]
        c = f_g * c + i_g * g_act
        h = o_g * jnp.tanh(c)
        # fwd half is time-aligned at row t (lanes 0:2H); bwd half at row
        # S-1-t (lanes 2H:4H).  The wrong halves are zeroed by wout_fold.
        hall_ref[t:t + 1, 0:H2] = h
        hall_ref[S - 1 - t:S - t, H2:2 * H2] = h

    # ---- hidden2tag: single (S,4H)x(4H,T) matmul -----------------------------
    feats = (jnp.dot(hall_ref[...], wout_ref[...], preferred_element_type=f32)
             + bout_ref[...])                                        # (S, T)

    # ---- Viterbi forward DP, alternating transition layouts -----------------
    trans_a = transp_ref[0]     # transT[prev, next]  (even steps)
    trans_b = transp_ref[1]     # trans [next, prev]  (odd steps)

    sub_i = lax.broadcasted_iota(jnp.int32, (T, T), 0)
    lane_i = lax.broadcasted_iota(jnp.int32, (T, T), 1)
    eye = sub_i == lane_i
    col_i = lax.broadcasted_iota(jnp.int32, (T, 1), 0)

    # per-step emissions pre-sliced / pre-transposed off the fv dependency chain
    feat_rows = [feats[t:t + 1, :] for t in range(0, S, 2)]          # (1,T) even steps
    feat_cols = [jnp.sum(jnp.where(eye, feats[t:t + 1, :], 0.0),
                         axis=1, keepdims=True)
                 for t in range(1, S, 2)]                            # (T,1) odd steps

    # step 0 (layout A) expects fv as a column over 'prev' (sublanes)
    fv_col = jnp.where(col_i == START_IDX, 0.0, -10000.0).astype(f32)  # (T,1)
    fv_row = jnp.zeros((1, T), f32)

    bp_rows, bp_cols = [], []
    for t in range(S):
        if t % 2 == 0:
            # layout A: m[prev, next]; reduce over sublanes -> row over 'next'
            m = fv_col + trans_a
            vmax = jnp.max(m, axis=0, keepdims=True)                 # (1, T)
            bp_rows.append(jnp.min(jnp.where(m == vmax, sub_i, T),
                                   axis=0, keepdims=True).astype(jnp.int32))
            fv_row = vmax + feat_rows[t // 2]                        # (1, T)
        else:
            # layout B: m[next, prev]; reduce over lanes -> column over 'next'
            m = fv_row + trans_b
            vmax = jnp.max(m, axis=1, keepdims=True)                 # (T, 1)
            bp_cols.append(jnp.min(jnp.where(m == vmax, lane_i, T),
                                   axis=1, keepdims=True).astype(jnp.int32))
            fv_col = vmax + feat_cols[t // 2]                        # (T, 1)

    # single stores for all backpointers (off the DP chain)
    bpa_ref[...] = jnp.concatenate(bp_rows, axis=0)                  # (S/2, T)
    bpb_ref[...] = jnp.concatenate(bp_cols, axis=1)                  # (T, S/2)
    # S is even -> last step left fv as a column over 'next'
    term_ref[...] = fv_col + tstop_ref[...]                          # (T, 1)


# =============================================================================
# Wrapper (glue in plain JAX)
# =============================================================================
def _vmem_spec():
    return pl.BlockSpec(memory_space=pltpu.MemorySpace.VMEM)


@jax.jit
def bilstm_crf_forward(sentence_ids, p):
    # embedding lookup (frozen pretrained embedding) -- glue gather
    emb = jnp.take(p["embedding"], sentence_ids, axis=0)             # (S, E)
    xin = jnp.concatenate([emb, emb[::-1]], axis=1)                  # (S, 2E)

    bp_a, bp_b, term = pl.pallas_call(
        bilstm_crf_kernel,
        out_shape=(jax.ShapeDtypeStruct((SH, T), jnp.int32),
                   jax.ShapeDtypeStruct((T, SH), jnp.int32),
                   jax.ShapeDtypeStruct((T, 1), jnp.float32)),
        in_specs=[_vmem_spec()] * 8,
        out_specs=(_vmem_spec(), _vmem_spec(), _vmem_spec()),
        scratch_shapes=[pltpu.VMEM((S, 2 * H2), jnp.float32)],
    )(xin, p["w_cat"], p["b_cat"], p["hc0"], p["wout_fold"], p["bout"],
      p["trans_pair"], p["trans_stop"])

    # reassemble the full (S, T) backpointer table (untimed glue)
    bp = jnp.zeros((S, T), jnp.int32)
    bp = bp.at[0::2, :].set(bp_a)          # even steps were stored as rows
    bp = bp.at[1::2, :].set(bp_b.T)        # odd steps were stored transposed

    term_row = term[:, 0]
    best_last = jnp.argmax(term_row).astype(jnp.int32)
    path_score = term_row[best_last]

    # terminal argmax + backtrace (scalar index chasing -> glue)
    def step(tag, bp_row):
        return bp_row[tag], tag

    _, outs = lax.scan(step, best_last, bp[::-1])   # emits tag_{S-1} .. tag_0
    best_path = outs[::-1]
    return path_score, best_path


# =============================================================================
# Parameter init (raw, PyTorch-like shapes) + one-time packing for the kernel
# =============================================================================
def init_raw_params(key):
    ks = jax.random.split(key, 12)
    s = 1.0 / (H ** 0.5)
    u = lambda k, shape: jax.random.uniform(k, shape, jnp.float32, -s, s)
    raw = dict(
        embedding=jax.random.normal(ks[0], (V, E), jnp.float32),
        # per-gate stacks, gate order i, f, g, o (PyTorch); b = b_ih + b_hh
        wxf=u(ks[1], (4, E, H)), whf=u(ks[2], (4, H, H)), bf=u(ks[3], (4, 1, H)),
        wxb=u(ks[4], (4, E, H)), whb=u(ks[5], (4, H, H)), bb=u(ks[6], (4, 1, H)),
        wout=u(ks[7], (2 * H, T)), bout=u(ks[8], (1, T)),
        # init_hidden() uses torch.randn each forward -> fixed normal draw here
        h0=jax.random.normal(ks[9], (2, H), jnp.float32),
        c0=jax.random.normal(ks[10], (2, H), jnp.float32),
    )
    trans = jax.random.normal(ks[11], (T, T), jnp.float32)
    trans = trans.at[START_IDX, :].set(-10000.0)
    trans = trans.at[:, STOP_IDX].set(-10000.0)
    raw["transitions"] = trans
    return raw


def pack_params(raw):
    """One-time packing into the fused / gate-packed layout the kernel uses."""

    def blockdiag(a, b):
        z_tr = jnp.zeros((a.shape[0], b.shape[1]), jnp.float32)
        z_bl = jnp.zeros((b.shape[0], a.shape[1]), jnp.float32)
        return jnp.concatenate(
            [jnp.concatenate([a, z_tr], axis=1),
             jnp.concatenate([z_bl, b], axis=1)], axis=0)

    # raw per-gate stacks are ordered (i, f, g, o); kernel packs lanes as i|f|o|g
    gate_order = (0, 1, 3, 2)
    wx_cols, wh_cols, b_cols = [], [], []
    for g in gate_order:
        wx_cols.append(blockdiag(raw["wxf"][g], raw["wxb"][g]))      # (2E, 2H)
        wh_cols.append(blockdiag(raw["whf"][g], raw["whb"][g]))      # (2H, 2H)
        b_cols.append(jnp.concatenate([raw["bf"][g], raw["bb"][g]], axis=1))
    wx_cat = jnp.concatenate(wx_cols, axis=1)                        # (2E, 256)
    wh_cat = jnp.concatenate(wh_cols, axis=1)                        # (2H, 256)
    w_cat = jnp.concatenate([wx_cat, wh_cat], axis=0)                # (128, 256)
    b_cat = jnp.concatenate(b_cols, axis=1)                          # (1, 256)

    hc0 = jnp.stack([jnp.concatenate([raw["h0"][0], raw["h0"][1]], axis=0),
                     jnp.concatenate([raw["c0"][0], raw["c0"][1]], axis=0)],
                    axis=0)                                          # (2, 2H)

    zHT = jnp.zeros((H, T), jnp.float32)
    wout_fold = jnp.concatenate(
        [raw["wout"][0:H, :],      # valid fwd half at lanes 0:H of h_all rows
         zHT,                      # garbage bwd half at lanes H:2H -> zero
         zHT,                      # garbage fwd half at lanes 2H:3H -> zero
         raw["wout"][H:2 * H, :]], # valid bwd half at lanes 3H:4H
        axis=0)                                                      # (4H, T)

    trans = raw["transitions"]
    trans_pair = jnp.stack([trans.T, trans], axis=0)                 # (2, T, T)
    trans_stop = trans[STOP_IDX, :].reshape(T, 1)                    # (T, 1)

    return dict(embedding=raw["embedding"], w_cat=w_cat, b_cat=b_cat, hc0=hc0,
                wout_fold=wout_fold, bout=raw["bout"],
                trans_pair=trans_pair, trans_stop=trans_stop)


# =============================================================================
# Pure-JAX reference (mirrors the PyTorch forward) for a correctness check
# =============================================================================
def reference_forward(sentence_ids, raw):
    emb = jnp.take(raw["embedding"], sentence_ids, axis=0)

    def cell(x, h, c, wx, wh, b):
        pre = [x @ wx[g] + h @ wh[g] + b[g][0] for g in range(4)]
        i = jax.nn.sigmoid(pre[0]); f = jax.nn.sigmoid(pre[1])
        g = jnp.tanh(pre[2]); o = jax.nn.sigmoid(pre[3])
        c = f * c + i * g
        return o * jnp.tanh(c), c

    hf, cf = raw["h0"][0], raw["c0"][0]
    hb, cb = raw["h0"][1], raw["c0"][1]
    fwd = []
    for t in range(S):
        hf, cf = cell(emb[t], hf, cf, raw["wxf"], raw["whf"], raw["bf"])
        fwd.append(hf)
    bwd = [None] * S
    for t in range(S - 1, -1, -1):
        hb, cb = cell(emb[t], hb, cb, raw["wxb"], raw["whb"], raw["bb"])
        bwd[t] = hb
    hcat = jnp.stack([jnp.concatenate([fwd[t], bwd[t]]) for t in range(S)])
    feats = hcat @ raw["wout"] + raw["bout"]                          # (S, T)

    trans = raw["transitions"]
    fv = jnp.full((T,), -10000.0).at[START_IDX].set(0.0)
    bps = []
    for t in range(S):
        m = fv[None, :] + trans                                       # m[next, prev]
        bps.append(jnp.argmax(m, axis=1))
        fv = jnp.max(m, axis=1) + feats[t]
    term = fv + trans[STOP_IDX]
    best = jnp.argmax(term)
    score = term[best]
    path = [best]
    for t in range(S - 1, 0, -1):
        best = bps[t][best]
        path.append(best)
    path.reverse()
    return score, jnp.stack(path)


if __name__ == "__main__":
    key = jax.random.PRNGKey(0)
    pkey, skey = jax.random.split(key)
    raw = init_raw_params(pkey)
    packed = pack_params(raw)
    sentence = jax.random.randint(skey, (S,), 0, V, dtype=jnp.int32)

    score, tag_seq = bilstm_crf_forward(sentence, packed)
    jax.block_until_ready((score, tag_seq))
    assert tag_seq.shape == (S,)

    ref_score, ref_path = reference_forward(sentence, raw)
    assert jnp.allclose(score, ref_score, atol=1e-1, rtol=1e-2), (score, ref_score)
    assert jnp.array_equal(tag_seq.astype(jnp.int32),
                           ref_path.astype(jnp.int32)), (tag_seq, ref_path)

    print("KERNEL_OK")
</pallas_src>

<mosaic_0001>
module attributes {stable_mosaic.version = 11 : i64} {
  func.func @bilstm_crf_kernel(%arg0: memref<8x64xf32, #tpu.memory_space<vmem>>, %arg1: memref<128x256xf32, #tpu.memory_space<vmem>>, %arg2: memref<1x256xf32, #tpu.memory_space<vmem>>, %arg3: memref<2x64xf32, #tpu.memory_space<vmem>>, %arg4: memref<128x8xf32, #tpu.memory_space<vmem>>, %arg5: memref<1x8xf32, #tpu.memory_space<vmem>>, %arg6: memref<2x8x8xf32, #tpu.memory_space<vmem>>, %arg7: memref<8x1xf32, #tpu.memory_space<vmem>>, %arg8: memref<4x8xi32, #tpu.memory_space<vmem>>, %arg9: memref<8x4xi32, #tpu.memory_space<vmem>>, %arg10: memref<8x1xf32, #tpu.memory_space<vmem>>, %arg11: memref<8x128xf32, #tpu.memory_space<vmem>>) attributes {dimension_semantics = [], scalar_prefetch = 0 : i64, scratch_operands = 1 : i64, tpu.core_type = #tpu.core_type<tc>} {
    %c0 = arith.constant 0 : index
    %c0_0 = arith.constant 0 : index
    %0 = vector.load %arg0[%c0, %c0_0] : memref<8x64xf32, #tpu.memory_space<vmem>>, vector<8x64xf32>
    %c0_1 = arith.constant 0 : index
    %c0_2 = arith.constant 0 : index
    %1 = vector.load %arg1[%c0_1, %c0_2] : memref<128x256xf32, #tpu.memory_space<vmem>>, vector<64x256xf32>
    %cst = arith.constant dense<0.000000e+00> : vector<8x256xf32>
    %2 = tpu.matmul %0, %1, %cst {dimension_numbers = #tpu.dot_dimension_numbers<[1], [0], [0], [1], [0, 0, 1, 1], [], []>} : vector<8x64xf32>, vector<64x256xf32>, vector<8x256xf32> -> vector<8x256xf32>
    %c0_3 = arith.constant 0 : index
    %c0_4 = arith.constant 0 : index
    %3 = vector.load %arg2[%c0_3, %c0_4] : memref<1x256xf32, #tpu.memory_space<vmem>>, vector<1x256xf32>
    %4 = vector.broadcast %3 : vector<1x256xf32> to vector<8x256xf32>
    %5 = arith.addf %2, %4 : vector<8x256xf32>
    %c64 = arith.constant 64 : index
    %c0_5 = arith.constant 0 : index
    %6 = vector.load %arg1[%c64, %c0_5] : memref<128x256xf32, #tpu.memory_space<vmem>>, vector<64x256xf32>
    %c0_6 = arith.constant 0 : index
    %c0_7 = arith.constant 0 : index
    %7 = vector.load %arg3[%c0_6, %c0_7] : memref<2x64xf32, #tpu.memory_space<vmem>>, vector<1x64xf32>
    %c1 = arith.constant 1 : index
    %c0_8 = arith.constant 0 : index
    %8 = vector.load %arg3[%c1, %c0_8] : memref<2x64xf32, #tpu.memory_space<vmem>>, vector<1x64xf32>
    %9 = vector.extract_strided_slice %5 {offsets = [0, 0], sizes = [1, 256], strides = [1, 1]} : vector<8x256xf32> to vector<1x256xf32>
    %cst_9 = arith.constant dense<0.000000e+00> : vector<1x256xf32>
    %10 = tpu.matmul %7, %6, %cst_9 {dimension_numbers = #tpu.dot_dimension_numbers<[1], [0], [0], [1], [0, 0, 1, 1], [], []>} : vector<1x64xf32>, vector<64x256xf32>, vector<1x256xf32> -> vector<1x256xf32>
    %11 = arith.addf %9, %10 : vector<1x256xf32>
    %12 = vector.extract_strided_slice %11 {offsets = [0, 0], sizes = [1, 192], strides = [1, 1]} : vector<1x256xf32> to vector<1x192xf32>
    %13 = arith.negf %12 : vector<1x192xf32>
    %14 = math.exp %13 : vector<1x192xf32>
    %cst_10 = arith.constant 1.000000e+00 : f32
    %15 = vector.broadcast %cst_10 : f32 to vector<1x192xf32>
    %16 = arith.addf %15, %14 : vector<1x192xf32>
    %17 = arith.divf %15, %16 : vector<1x192xf32>
    %18 = vector.extract_strided_slice %11 {offsets = [0, 192], sizes = [1, 64], strides = [1, 1]} : vector<1x256xf32> to vector<1x64xf32>
    %19 = math.tanh %18 : vector<1x64xf32>
    %20 = vector.extract_strided_slice %17 {offsets = [0, 0], sizes = [1, 64], strides = [1, 1]} : vector<1x192xf32> to vector<1x64xf32>
    %21 = vector.extract_strided_slice %17 {offsets = [0, 64], sizes = [1, 64], strides = [1, 1]} : vector<1x192xf32> to vector<1x64xf32>
    %22 = vector.extract_strided_slice %17 {offsets = [0, 128], sizes = [1, 64], strides = [1, 1]} : vector<1x192xf32> to vector<1x64xf32>
    %23 = arith.mulf %21, %8 : vector<1x64xf32>
    %24 = arith.mulf %20, %19 : vector<1x64xf32>
    %25 = arith.addf %23, %24 : vector<1x64xf32>
    %26 = math.tanh %25 : vector<1x64xf32>
    %27 = arith.mulf %22, %26 : vector<1x64xf32>
    %c0_11 = arith.constant 0 : index
    %c0_12 = arith.constant 0 : index
    %28 = vector.load %arg11[%c0_11, %c0_12] : memref<8x128xf32, #tpu.memory_space<vmem>>, vector<1x64xf32>
    tpu.vector_store %arg11[%c0_11, %c0_12], %27 {strides = array<i32>} : memref<8x128xf32, #tpu.memory_space<vmem>>, vector<1x64xf32>,
    %c7 = arith.constant 7 : index
    %c64_13 = arith.constant 64 : index
    %29 = vector.load %arg11[%c7, %c64_13] : memref<8x128xf32, #tpu.memory_space<vmem>>, vector<1x64xf32>
    tpu.vector_store %arg11[%c7, %c64_13], %27 {strides = array<i32>} : memref<8x128xf32, #tpu.memory_space<vmem>>, vector<1x64xf32>,
    %30 = vector.extract_strided_slice %5 {offsets = [1, 0], sizes = [1, 256], strides = [1, 1]} : vector<8x256xf32> to vector<1x256xf32>
    %cst_14 = arith.constant dense<0.000000e+00> : vector<1x256xf32>
    %31 = tpu.matmul %27, %6, %cst_14 {dimension_numbers = #tpu.dot_dimension_numbers<[1], [0], [0], [1], [0, 0, 1, 1], [], []>} : vector<1x64xf32>, vector<64x256xf32>, vector<1x256xf32> -> vector<1x256xf32>
    %32 = arith.addf %30, %31 : vector<1x256xf32>
    %33 = vector.extract_strided_slice %32 {offsets = [0, 0], sizes = [1, 192], strides = [1, 1]} : vector<1x256xf32> to vector<1x192xf32>
    %34 = arith.negf %33 : vector<1x192xf32>
    %35 = math.exp %34 : vector<1x192xf32>
    %cst_15 = arith.constant 1.000000e+00 : f32
    %36 = vector.broadcast %cst_15 : f32 to vector<1x192xf32>
    %37 = arith.addf %36, %35 : vector<1x192xf32>
    %38 = arith.divf %36, %37 : vector<1x192xf32>
    %39 = vector.extract_strided_slice %32 {offsets = [0, 192], sizes = [1, 64], strides = [1, 1]} : vector<1x256xf32> to vector<1x64xf32>
    %40 = math.tanh %39 : vector<1x64xf32>
    %41 = vector.extract_strided_slice %38 {offsets = [0, 0], sizes = [1, 64], strides = [1, 1]} : vector<1x192xf32> to vector<1x64xf32>
    %42 = vector.extract_strided_slice %38 {offsets = [0, 64], sizes = [1, 64], strides = [1, 1]} : vector<1x192xf32> to vector<1x64xf32>
    %43 = vector.extract_strided_slice %38 {offsets = [0, 128], sizes = [1, 64], strides = [1, 1]} : vector<1x192xf32> to vector<1x64xf32>
    %44 = arith.mulf %42, %25 : vector<1x64xf32>
    %45 = arith.mulf %41, %40 : vector<1x64xf32>
    %46 = arith.addf %44, %45 : vector<1x64xf32>
    %47 = math.tanh %46 : vector<1x64xf32>
    %48 = arith.mulf %43, %47 : vector<1x64xf32>
    %c1_16 = arith.constant 1 : index
    %c0_17 = arith.constant 0 : index
    %49 = vector.load %arg11[%c1_16, %c0_17] : memref<8x128xf32, #tpu.memory_space<vmem>>, vector<1x64xf32>
    tpu.vector_store %arg11[%c1_16, %c0_17], %48 {strides = array<i32>} : memref<8x128xf32, #tpu.memory_space<vmem>>, vector<1x64xf32>,
    %c6 = arith.constant 6 : index
    %c64_18 = arith.constant 64 : index
    %50 = vector.load %arg11[%c6, %c64_18] : memref<8x128xf32, #tpu.memory_space<vmem>>, vector<1x64xf32>
    tpu.vector_store %arg11[%c6, %c64_18], %48 {strides = array<i32>} : memref<8x128xf32, #tpu.memory_space<vmem>>, vector<1x64xf32>,
    %51 = vector.extract_strided_slice %5 {offsets = [2, 0], sizes = [1, 256], strides = [1, 1]} : vector<8x256xf32> to vector<1x256xf32>
    %cst_19 = arith.constant dense<0.000000e+00> : vector<1x256xf32>
    %52 = tpu.matmul %48, %6, %cst_19 {dimension_numbers = #tpu.dot_dimension_numbers<[1], [0], [0], [1], [0, 0, 1, 1], [], []>} : vector<1x64xf32>, vector<64x256xf32>, vector<1x256xf32> -> vector<1x256xf32>
    %53 = arith.addf %51, %52 : vector<1x256xf32>
    %54 = vector.extract_strided_slice %53 {offsets = [0, 0], sizes = [1, 192], strides = [1, 1]} : vector<1x256xf32> to vector<1x192xf32>
    %55 = arith.negf %54 : vector<1x192xf32>
    %56 = math.exp %55 : vector<1x192xf32>
    %cst_20 = arith.constant 1.000000e+00 : f32
    %57 = vector.broadcast %cst_20 : f32 to vector<1x192xf32>
    %58 = arith.addf %57, %56 : vector<1x192xf32>
    %59 = arith.divf %57, %58 : vector<1x192xf32>
    %60 = vector.extract_strided_slice %53 {offsets = [0, 192], sizes = [1, 64], strides = [1, 1]} : vector<1x256xf32> to vector<1x64xf32>
    %61 = math.tanh %60 : vector<1x64xf32>
    %62 = vector.extract_strided_slice %59 {offsets = [0, 0], sizes = [1, 64], strides = [1, 1]} : vector<1x192xf32> to vector<1x64xf32>
    %63 = vector.extract_strided_slice %59 {offsets = [0, 64], sizes = [1, 64], strides = [1, 1]} : vector<1x192xf32> to vector<1x64xf32>
    %64 = vector.extract_strided_slice %59 {offsets = [0, 128], sizes = [1, 64], strides = [1, 1]} : vector<1x192xf32> to vector<1x64xf32>
    %65 = arith.mulf %63, %46 : vector<1x64xf32>
    %66 = arith.mulf %62, %61 : vector<1x64xf32>
    %67 = arith.addf %65, %66 : vector<1x64xf32>
    %68 = math.tanh %67 : vector<1x64xf32>
    %69 = arith.mulf %64, %68 : vector<1x64xf32>
    %c2 = arith.constant 2 : index
    %c0_21 = arith.constant 0 : index
    %70 = vector.load %arg11[%c2, %c0_21] : memref<8x128xf32, #tpu.memory_space<vmem>>, vector<1x64xf32>
    tpu.vector_store %arg11[%c2, %c0_21], %69 {strides = array<i32>} : memref<8x128xf32, #tpu.memory_space<vmem>>, vector<1x64xf32>,
    %c5 = arith.constant 5 : index
    %c64_22 = arith.constant 64 : index
    %71 = vector.load %arg11[%c5, %c64_22] : memref<8x128xf32, #tpu.memory_space<vmem>>, vector<1x64xf32>
    tpu.vector_store %arg11[%c5, %c64_22], %69 {strides = array<i32>} : memref<8x128xf32, #tpu.memory_space<vmem>>, vector<1x64xf32>,
    %72 = vector.extract_strided_slice %5 {offsets = [3, 0], sizes = [1, 256], strides = [1, 1]} : vector<8x256xf32> to vector<1x256xf32>
    %cst_23 = arith.constant dense<0.000000e+00> : vector<1x256xf32>
    %73 = tpu.matmul %69, %6, %cst_23 {dimension_numbers = #tpu.dot_dimension_numbers<[1], [0], [0], [1], [0, 0, 1, 1], [], []>} : vector<1x64xf32>, vector<64x256xf32>, vector<1x256xf32> -> vector<1x256xf32>
    %74 = arith.addf %72, %73 : vector<1x256xf32>
    %75 = vector.extract_strided_slice %74 {offsets = [0, 0], sizes = [1, 192], strides = [1, 1]} : vector<1x256xf32> to vector<1x192xf32>
    %76 = arith.negf %75 : vector<1x192xf32>
    %77 = math.exp %76 : vector<1x192xf32>
    %cst_24 = arith.constant 1.000000e+00 : f32
    %78 = vector.broadcast %cst_24 : f32 to vector<1x192xf32>
    %79 = arith.addf %78, %77 : vector<1x192xf32>
    %80 = arith.divf %78, %79 : vector<1x192xf32>
    %81 = vector.extract_strided_slice %74 {offsets = [0, 192], sizes = [1, 64], strides = [1, 1]} : vector<1x256xf32> to vector<1x64xf32>
    %82 = math.tanh %81 : vector<1x64xf32>
    %83 = vector.extract_strided_slice %80 {offsets = [0, 0], sizes = [1, 64], strides = [1, 1]} : vector<1x192xf32> to vector<1x64xf32>
    %84 = vector.extract_strided_slice %80 {offsets = [0, 64], sizes = [1, 64], strides = [1, 1]} : vector<1x192xf32> to vector<1x64xf32>
    %85 = vector.extract_strided_slice %80 {offsets = [0, 128], sizes = [1, 64], strides = [1, 1]} : vector<1x192xf32> to vector<1x64xf32>
    %86 = arith.mulf %84, %67 : vector<1x64xf32>
    %87 = arith.mulf %83, %82 : vector<1x64xf32>
    %88 = arith.addf %86, %87 : vector<1x64xf32>
    %89 = math.tanh %88 : vector<1x64xf32>
    %90 = arith.mulf %85, %89 : vector<1x64xf32>
    %c3 = arith.constant 3 : index
    %c0_25 = arith.constant 0 : index
    %91 = vector.load %arg11[%c3, %c0_25] : memref<8x128xf32, #tpu.memory_space<vmem>>, vector<1x64xf32>
    tpu.vector_store %arg11[%c3, %c0_25], %90 {strides = array<i32>} : memref<8x128xf32, #tpu.memory_space<vmem>>, vector<1x64xf32>,
    %c4 = arith.constant 4 : index
    %c64_26 = arith.constant 64 : index
    %92 = vector.load %arg11[%c4, %c64_26] : memref<8x128xf32, #tpu.memory_space<vmem>>, vector<1x64xf32>
    tpu.vector_store %arg11[%c4, %c64_26], %90 {strides = array<i32>} : memref<8x128xf32, #tpu.memory_space<vmem>>, vector<1x64xf32>,
    %93 = vector.extract_strided_slice %5 {offsets = [4, 0], sizes = [1, 256], strides = [1, 1]} : vector<8x256xf32> to vector<1x256xf32>
    %cst_27 = arith.constant dense<0.000000e+00> : vector<1x256xf32>
    %94 = tpu.matmul %90, %6, %cst_27 {dimension_numbers = #tpu.dot_dimension_numbers<[1], [0], [0], [1], [0, 0, 1, 1], [], []>} : vector<1x64xf32>, vector<64x256xf32>, vector<1x256xf32> -> vector<1x256xf32>
    %95 = arith.addf %93, %94 : vector<1x256xf32>
    %96 = vector.extract_strided_slice %95 {offsets = [0, 0], sizes = [1, 192], strides = [1, 1]} : vector<1x256xf32> to vector<1x192xf32>
    %97 = arith.negf %96 : vector<1x192xf32>
    %98 = math.exp %97 : vector<1x192xf32>
    %cst_28 = arith.constant 1.000000e+00 : f32
    %99 = vector.broadcast %cst_28 : f32 to vector<1x192xf32>
    %100 = arith.addf %99, %98 : vector<1x192xf32>
    %101 = arith.divf %99, %100 : vector<1x192xf32>
    %102 = vector.extract_strided_slice %95 {offsets = [0, 192], sizes = [1, 64], strides = [1, 1]} : vector<1x256xf32> to vector<1x64xf32>
    %103 = math.tanh %102 : vector<1x64xf32>
    %104 = vector.extract_strided_slice %101 {offsets = [0, 0], sizes = [1, 64], strides = [1, 1]} : vector<1x192xf32> to vector<1x64xf32>
    %105 = vector.extract_strided_slice %101 {offsets = [0, 64], sizes = [1, 64], strides = [1, 1]} : vector<1x192xf32> to vector<1x64xf32>
    %106 = vector.extract_strided_slice %101 {offsets = [0, 128], sizes = [1, 64], strides = [1, 1]} : vector<1x192xf32> to vector<1x64xf32>
    %107 = arith.mulf %105, %88 : vector<1x64xf32>
    %108 = arith.mulf %104, %103 : vector<1x64xf32>
    %109 = arith.addf %107, %108 : vector<1x64xf32>
    %110 = math.tanh %109 : vector<1x64xf32>
    %111 = arith.mulf %106, %110 : vector<1x64xf32>
    %c4_29 = arith.constant 4 : index
    %c0_30 = arith.constant 0 : index
    %112 = vector.load %arg11[%c4_29, %c0_30] : memref<8x128xf32, #tpu.memory_space<vmem>>, vector<1x64xf32>
    tpu.vector_store %arg11[%c4_29, %c0_30], %111 {strides = array<i32>} : memref<8x128xf32, #tpu.memory_space<vmem>>, vector<1x64xf32>,
    %c3_31 = arith.constant 3 : index
    %c64_32 = arith.constant 64 : index
    %113 = vector.load %arg11[%c3_31, %c64_32] : memref<8x128xf32, #tpu.memory_space<vmem>>, vector<1x64xf32>
    tpu.vector_store %arg11[%c3_31, %c64_32], %111 {strides = array<i32>} : memref<8x128xf32, #tpu.memory_space<vmem>>, vector<1x64xf32>,
    %114 = vector.extract_strided_slice %5 {offsets = [5, 0], sizes = [1, 256], strides = [1, 1]} : vector<8x256xf32> to vector<1x256xf32>
    %cst_33 = arith.constant dense<0.000000e+00> : vector<1x256xf32>
    %115 = tpu.matmul %111, %6, %cst_33 {dimension_numbers = #tpu.dot_dimension_numbers<[1], [0], [0], [1], [0, 0, 1, 1], [], []>} : vector<1x64xf32>, vector<64x256xf32>, vector<1x256xf32> -> vector<1x256xf32>
    %116 = arith.addf %114, %115 : vector<1x256xf32>
    %117 = vector.extract_strided_slice %116 {offsets = [0, 0], sizes = [1, 192], strides = [1, 1]} : vector<1x256xf32> to vector<1x192xf32>
    %118 = arith.negf %117 : vector<1x192xf32>
    %119 = math.exp %118 : vector<1x192xf32>
    %cst_34 = arith.constant 1.000000e+00 : f32
    %120 = vector.broadcast %cst_34 : f32 to vector<1x192xf32>
    %121 = arith.addf %120, %119 : vector<1x192xf32>
    %122 = arith.divf %120, %121 : vector<1x192xf32>
    %123 = vector.extract_strided_slice %116 {offsets = [0, 192], sizes = [1, 64], strides = [1, 1]} : vector<1x256xf32> to vector<1x64xf32>
    %124 = math.tanh %123 : vector<1x64xf32>
    %125 = vector.extract_strided_slice %122 {offsets = [0, 0], sizes = [1, 64], strides = [1, 1]} : vector<1x192xf32> to vector<1x64xf32>
    %126 = vector.extract_strided_slice %122 {offsets = [0, 64], sizes = [1, 64], strides = [1, 1]} : vector<1x192xf32> to vector<1x64xf32>
    %127 = vector.extract_strided_slice %122 {offsets = [0, 128], sizes = [1, 64], strides = [1, 1]} : vector<1x192xf32> to vector<1x64xf32>
    %128 = arith.mulf %126, %109 : vector<1x64xf32>
    %129 = arith.mulf %125, %124 : vector<1x64xf32>
    %130 = arith.addf %128, %129 : vector<1x64xf32>
    %131 = math.tanh %130 : vector<1x64xf32>
    %132 = arith.mulf %127, %131 : vector<1x64xf32>
    %c5_35 = arith.constant 5 : index
    %c0_36 = arith.constant 0 : index
    %133 = vector.load %arg11[%c5_35, %c0_36] : memref<8x128xf32, #tpu.memory_space<vmem>>, vector<1x64xf32>
    tpu.vector_store %arg11[%c5_35, %c0_36], %132 {strides = array<i32>} : memref<8x128xf32, #tpu.memory_space<vmem>>, vector<1x64xf32>,
    %c2_37 = arith.constant 2 : index
    %c64_38 = arith.constant 64 : index
    %134 = vector.load %arg11[%c2_37, %c64_38] : memref<8x128xf32, #tpu.memory_space<vmem>>, vector<1x64xf32>
    tpu.vector_store %arg11[%c2_37, %c64_38], %132 {strides = array<i32>} : memref<8x128xf32, #tpu.memory_space<vmem>>, vector<1x64xf32>,
    %135 = vector.extract_strided_slice %5 {offsets = [6, 0], sizes = [1, 256], strides = [1, 1]} : vector<8x256xf32> to vector<1x256xf32>
    %cst_39 = arith.constant dense<0.000000e+00> : vector<1x256xf32>
    %136 = tpu.matmul %132, %6, %cst_39 {dimension_numbers = #tpu.dot_dimension_numbers<[1], [0], [0], [1], [0, 0, 1, 1], [], []>} : vector<1x64xf32>, vector<64x256xf32>, vector<1x256xf32> -> vector<1x256xf32>
    %137 = arith.addf %135, %136 : vector<1x256xf32>
    %138 = vector.extract_strided_slice %137 {offsets = [0, 0], sizes = [1, 192], strides = [1, 1]} : vector<1x256xf32> to vector<1x192xf32>
    %139 = arith.negf %138 : vector<1x192xf32>
    %140 = math.exp %139 : vector<1x192xf32>
    %cst_40 = arith.constant 1.000000e+00 : f32
    %141 = vector.broadcast %cst_40 : f32 to vector<1x192xf32>
    %142 = arith.addf %141, %140 : vector<1x192xf32>
    %143 = arith.divf %141, %142 : vector<1x192xf32>
    %144 = vector.extract_strided_slice %137 {offsets = [0, 192], sizes = [1, 64], strides = [1, 1]} : vector<1x256xf32> to vector<1x64xf32>
    %145 = math.tanh %144 : vector<1x64xf32>
    %146 = vector.extract_strided_slice %143 {offsets = [0, 0], sizes = [1, 64], strides = [1, 1]} : vector<1x192xf32> to vector<1x64xf32>
    %147 = vector.extract_strided_slice %143 {offsets = [0, 64], sizes = [1, 64], strides = [1, 1]} : vector<1x192xf32> to vector<1x64xf32>
    %148 = vector.extract_strided_slice %143 {offsets = [0, 128], sizes = [1, 64], strides = [1, 1]} : vector<1x192xf32> to vector<1x64xf32>
    %149 = arith.mulf %147, %130 : vector<1x64xf32>
    %150 = arith.mulf %146, %145 : vector<1x64xf32>
    %151 = arith.addf %149, %150 : vector<1x64xf32>
    %152 = math.tanh %151 : vector<1x64xf32>
    %153 = arith.mulf %148, %152 : vector<1x64xf32>
    %c6_41 = arith.constant 6 : index
    %c0_42 = arith.constant 0 : index
    %154 = vector.load %arg11[%c6_41, %c0_42] : memref<8x128xf32, #tpu.memory_space<vmem>>, vector<1x64xf32>
    tpu.vector_store %arg11[%c6_41, %c0_42], %153 {strides = array<i32>} : memref<8x128xf32, #tpu.memory_space<vmem>>, vector<1x64xf32>,
    %c1_43 = arith.constant 1 : index
    %c64_44 = arith.constant 64 : index
    %155 = vector.load %arg11[%c1_43, %c64_44] : memref<8x128xf32, #tpu.memory_space<vmem>>, vector<1x64xf32>
    tpu.vector_store %arg11[%c1_43, %c64_44], %153 {strides = array<i32>} : memref<8x128xf32, #tpu.memory_space<vmem>>, vector<1x64xf32>,
    %156 = vector.extract_strided_slice %5 {offsets = [7, 0], sizes = [1, 256], strides = [1, 1]} : vector<8x256xf32> to vector<1x256xf32>
    %cst_45 = arith.constant dense<0.000000e+00> : vector<1x256xf32>
    %157 = tpu.matmul %153, %6, %cst_45 {dimension_numbers = #tpu.dot_dimension_numbers<[1], [0], [0], [1], [0, 0, 1, 1], [], []>} : vector<1x64xf32>, vector<64x256xf32>, vector<1x256xf32> -> vector<1x256xf32>
    %158 = arith.addf %156, %157 : vector<1x256xf32>
    %159 = vector.extract_strided_slice %158 {offsets = [0, 0], sizes = [1, 192], strides = [1, 1]} : vector<1x256xf32> to vector<1x192xf32>
    %160 = arith.negf %159 : vector<1x192xf32>
    %161 = math.exp %160 : vector<1x192xf32>
    %cst_46 = arith.constant 1.000000e+00 : f32
    %162 = vector.broadcast %cst_46 : f32 to vector<1x192xf32>
    %163 = arith.addf %162, %161 : vector<1x192xf32>
    %164 = arith.divf %162, %163 : vector<1x192xf32>
    %165 = vector.extract_strided_slice %158 {offsets = [0, 192], sizes = [1, 64], strides = [1, 1]} : vector<1x256xf32> to vector<1x64xf32>
    %166 = math.tanh %165 : vector<1x64xf32>
    %167 = vector.extract_strided_slice %164 {offsets = [0, 0], sizes = [1, 64], strides = [1, 1]} : vector<1x192xf32> to vector<1x64xf32>
    %168 = vector.extract_strided_slice %164 {offsets = [0, 64], sizes = [1, 64], strides = [1, 1]} : vector<1x192xf32> to vector<1x64xf32>
    %169 = vector.extract_strided_slice %164 {offsets = [0, 128], sizes = [1, 64], strides = [1, 1]} : vector<1x192xf32> to vector<1x64xf32>
    %170 = arith.mulf %168, %151 : vector<1x64xf32>
    %171 = arith.mulf %167, %166 : vector<1x64xf32>
    %172 = arith.addf %170, %171 : vector<1x64xf32>
    %173 = math.tanh %172 : vector<1x64xf32>
    %174 = arith.mulf %169, %173 : vector<1x64xf32>
    %c7_47 = arith.constant 7 : index
    %c0_48 = arith.constant 0 : index
    %175 = vector.load %arg11[%c7_47, %c0_48] : memref<8x128xf32, #tpu.memory_space<vmem>>, vector<1x64xf32>
    tpu.vector_store %arg11[%c7_47, %c0_48], %174 {strides = array<i32>} : memref<8x128xf32, #tpu.memory_space<vmem>>, vector<1x64xf32>,
    %c0_49 = arith.constant 0 : index
    %c64_50 = arith.constant 64 : index
    %176 = vector.load %arg11[%c0_49, %c64_50] : memref<8x128xf32, #tpu.memory_space<vmem>>, vector<1x64xf32>
    tpu.vector_store %arg11[%c0_49, %c64_50], %174 {strides = array<i32>} : memref<8x128xf32, #tpu.memory_space<vmem>>, vector<1x64xf32>,
    %c0_51 = arith.constant 0 : index
    %c0_52 = arith.constant 0 : index
    %177 = vector.load %arg11[%c0_51, %c0_52] : memref<8x128xf32, #tpu.memory_space<vmem>>, vector<8x128xf32>
    %c0_53 = arith.constant 0 : index
    %c0_54 = arith.constant 0 : index
    %178 = vector.load %arg4[%c0_53, %c0_54] : memref<128x8xf32, #tpu.memory_space<vmem>>, vector<128x8xf32>
    %cst_55 = arith.constant dense<0.000000e+00> : vector<8x8xf32>
    %179 = tpu.matmul %177, %178, %cst_55 {dimension_numbers = #tpu.dot_dimension_numbers<[1], [0], [0], [1], [0, 0, 1, 1], [], []>} : vector<8x128xf32>, vector<128x8xf32>, vector<8x8xf32> -> vector<8x8xf32>
    %c0_56 = arith.constant 0 : index
    %c0_57 = arith.constant 0 : index
    %180 = vector.load %arg5[%c0_56, %c0_57] : memref<1x8xf32, #tpu.memory_space<vmem>>, vector<1x8xf32>
    %181 = vector.broadcast %180 : vector<1x8xf32> to vector<8x8xf32>
    %182 = arith.addf %179, %181 : vector<8x8xf32>
    %c0_58 = arith.constant 0 : index
    %c0_59 = arith.constant 0 : index
    %c0_60 = arith.constant 0 : index
    %183 = vector.load %arg6[%c0_58, %c0_59, %c0_60] : memref<2x8x8xf32, #tpu.memory_space<vmem>>, vector<1x8x8xf32>
    %184 = vector.shape_cast %183 : vector<1x8x8xf32> to vector<8x8xf32>
    %c1_61 = arith.constant 1 : index
    %c0_62 = arith.constant 0 : index
    %c0_63 = arith.constant 0 : index
    %185 = vector.load %arg6[%c1_61, %c0_62, %c0_63] : memref<2x8x8xf32, #tpu.memory_space<vmem>>, vector<1x8x8xf32>
    %186 = vector.shape_cast %185 : vector<1x8x8xf32> to vector<8x8xf32>
    %187 = tpu.iota {dimensions = array<i32: 0>} : vector<8x8xi32>
    %188 = tpu.iota {dimensions = array<i32: 1>} : vector<8x8xi32>
    %189 = arith.cmpi eq, %187, %188 : vector<8x8xi32>
    %190 = tpu.iota {dimensions = array<i32: 0>} : vector<8x1xi32>
    %191 = vector.extract_strided_slice %182 {offsets = [0, 0], sizes = [1, 8], strides = [1, 1]} : vector<8x8xf32> to vector<1x8xf32>
    %192 = vector.extract_strided_slice %182 {offsets = [2, 0], sizes = [1, 8], strides = [1, 1]} : vector<8x8xf32> to vector<1x8xf32>
    %193 = vector.extract_strided_slice %182 {offsets = [4, 0], sizes = [1, 8], strides = [1, 1]} : vector<8x8xf32> to vector<1x8xf32>
    %194 = vector.extract_strided_slice %182 {offsets = [6, 0], sizes = [1, 8], strides = [1, 1]} : vector<8x8xf32> to vector<1x8xf32>
    %195 = vector.extract_strided_slice %182 {offsets = [1, 0], sizes = [1, 8], strides = [1, 1]} : vector<8x8xf32> to vector<1x8xf32>
    %cst_64 = arith.constant 0.000000e+00 : f32
    %196 = vector.shape_cast %195 : vector<1x8xf32> to vector<1x8xf32>
    %197 = vector.broadcast %196 : vector<1x8xf32> to vector<8x8xf32>
    %198 = vector.broadcast %cst_64 : f32 to vector<8x8xf32>
    %199 = arith.select %189, %197, %198 : vector<8x8xi1>, vector<8x8xf32>
    %cst_65 = arith.constant dense<0.000000e+00> : vector<8xf32>
    %200 = vector.multi_reduction <add>, %199, %cst_65 [1] : vector<8x8xf32> to vector<8xf32>
    %201 = vector.shape_cast %200 : vector<8xf32> to vector<8x1xf32>
    %202 = vector.extract_strided_slice %182 {offsets = [3, 0], sizes = [1, 8], strides = [1, 1]} : vector<8x8xf32> to vector<1x8xf32>
    %cst_66 = arith.constant 0.000000e+00 : f32
    %203 = vector.shape_cast %202 : vector<1x8xf32> to vector<1x8xf32>
    %204 = vector.broadcast %203 : vector<1x8xf32> to vector<8x8xf32>
    %205 = vector.broadcast %cst_66 : f32 to vector<8x8xf32>
    %206 = arith.select %189, %204, %205 : vector<8x8xi1>, vector<8x8xf32>
    %cst_67 = arith.constant dense<0.000000e+00> : vector<8xf32>
    %207 = vector.multi_reduction <add>, %206, %cst_67 [1] : vector<8x8xf32> to vector<8xf32>
    %208 = vector.shape_cast %207 : vector<8xf32> to vector<8x1xf32>
    %209 = vector.extract_strided_slice %182 {offsets = [5, 0], sizes = [1, 8], strides = [1, 1]} : vector<8x8xf32> to vector<1x8xf32>
    %cst_68 = arith.constant 0.000000e+00 : f32
    %210 = vector.shape_cast %209 : vector<1x8xf32> to vector<1x8xf32>
    %211 = vector.broadcast %210 : vector<1x8xf32> to vector<8x8xf32>
    %212 = vector.broadcast %cst_68 : f32 to vector<8x8xf32>
    %213 = arith.select %189, %211, %212 : vector<8x8xi1>, vector<8x8xf32>
    %cst_69 = arith.constant dense<0.000000e+00> : vector<8xf32>
    %214 = vector.multi_reduction <add>, %213, %cst_69 [1] : vector<8x8xf32> to vector<8xf32>
    %215 = vector.shape_cast %214 : vector<8xf32> to vector<8x1xf32>
    %216 = vector.extract_strided_slice %182 {offsets = [7, 0], sizes = [1, 8], strides = [1, 1]} : vector<8x8xf32> to vector<1x8xf32>
    %cst_70 = arith.constant 0.000000e+00 : f32
    %217 = vector.shape_cast %216 : vector<1x8xf32> to vector<1x8xf32>
    %218 = vector.broadcast %217 : vector<1x8xf32> to vector<8x8xf32>
    %219 = vector.broadcast %cst_70 : f32 to vector<8x8xf32>
    %220 = arith.select %189, %218, %219 : vector<8x8xi1>, vector<8x8xf32>
    %cst_71 = arith.constant dense<0.000000e+00> : vector<8xf32>
    %221 = vector.multi_reduction <add>, %220, %cst_71 [1] : vector<8x8xf32> to vector<8xf32>
    %222 = vector.shape_cast %221 : vector<8xf32> to vector<8x1xf32>
    %c6_i32 = arith.constant 6 : i32
    %223 = vector.broadcast %c6_i32 : i32 to vector<8x1xi32>
    %224 = arith.cmpi eq, %190, %223 : vector<8x1xi32>
    %cst_72 = arith.constant 0.000000e+00 : f32
    %cst_73 = arith.constant -1.000000e+04 : f32
    %225 = vector.broadcast %cst_72 : f32 to vector<8x1xf32>
    %226 = vector.broadcast %cst_73 : f32 to vector<8x1xf32>
    %227 = arith.select %224, %225, %226 : vector<8x1xi1>, vector<8x1xf32>
    %228 = vector.broadcast %227 : vector<8x1xf32> to vector<8x8xf32>
    %229 = arith.addf %228, %184 : vector<8x8xf32>
    %cst_74 = arith.constant dense<0xFF800000> : vector<8xf32>
    %230 = vector.multi_reduction <maximumf>, %229, %cst_74 [0] : vector<8x8xf32> to vector<8xf32>
    %231 = vector.shape_cast %230 : vector<8xf32> to vector<1x8xf32>
    %232 = vector.broadcast %231 : vector<1x8xf32> to vector<8x8xf32>
    %233 = arith.cmpf oeq, %229, %232 : vector<8x8xf32>
    %c8_i32 = arith.constant 8 : i32
    %234 = vector.broadcast %c8_i32 : i32 to vector<8x8xi32>
    %235 = arith.select %233, %187, %234 : vector<8x8xi1>, vector<8x8xi32>
    %cst_75 = arith.constant dense<2147483647> : vector<8xi32>
    %236 = vector.multi_reduction <minsi>, %235, %cst_75 [0] : vector<8x8xi32> to vector<8xi32>
    %237 = vector.shape_cast %236 : vector<8xi32> to vector<1x8xi32>
    %238 = arith.addf %231, %191 : vector<1x8xf32>
    %239 = vector.broadcast %238 : vector<1x8xf32> to vector<8x8xf32>
    %240 = arith.addf %239, %186 : vector<8x8xf32>
    %cst_76 = arith.constant dense<0xFF800000> : vector<8xf32>
    %241 = vector.multi_reduction <maximumf>, %240, %cst_76 [1] : vector<8x8xf32> to vector<8xf32>
    %242 = vector.shape_cast %241 : vector<8xf32> to vector<8x1xf32>
    %243 = vector.broadcast %242 : vector<8x1xf32> to vector<8x8xf32>
    %244 = arith.cmpf oeq, %240, %243 : vector<8x8xf32>
    %c8_i32_77 = arith.constant 8 : i32
    %245 = vector.broadcast %c8_i32_77 : i32 to vector<8x8xi32>
    %246 = arith.select %244, %188, %245 : vector<8x8xi1>, vector<8x8xi32>
    %cst_78 = arith.constant dense<2147483647> : vector<8xi32>
    %247 = vector.multi_reduction <minsi>, %246, %cst_78 [1] : vector<8x8xi32> to vector<8xi32>
    %248 = vector.shape_cast %247 : vector<8xi32> to vector<8x1xi32>
    %249 = arith.addf %242, %201 : vector<8x1xf32>
    %250 = vector.broadcast %249 : vector<8x1xf32> to vector<8x8xf32>
    %251 = arith.addf %250, %184 : vector<8x8xf32>
    %cst_79 = arith.constant dense<0xFF800000> : vector<8xf32>
    %252 = vector.multi_reduction <maximumf>, %251, %cst_79 [0] : vector<8x8xf32> to vector<8xf32>
    %253 = vector.shape_cast %252 : vector<8xf32> to vector<1x8xf32>
    %254 = vector.broadcast %253 : vector<1x8xf32> to vector<8x8xf32>
    %255 = arith.cmpf oeq, %251, %254 : vector<8x8xf32>
    %c8_i32_80 = arith.constant 8 : i32
    %256 = vector.broadcast %c8_i32_80 : i32 to vector<8x8xi32>
    %257 = arith.select %255, %187, %256 : vector<8x8xi1>, vector<8x8xi32>
    %cst_81 = arith.constant dense<2147483647> : vector<8xi32>
    %258 = vector.multi_reduction <minsi>, %257, %cst_81 [0] : vector<8x8xi32> to vector<8xi32>
    %259 = vector.shape_cast %258 : vector<8xi32> to vector<1x8xi32>
    %260 = arith.addf %253, %192 : vector<1x8xf32>
    %261 = vector.broadcast %260 : vector<1x8xf32> to vector<8x8xf32>
    %262 = arith.addf %261, %186 : vector<8x8xf32>
    %cst_82 = arith.constant dense<0xFF800000> : vector<8xf32>
    %263 = vector.multi_reduction <maximumf>, %262, %cst_82 [1] : vector<8x8xf32> to vector<8xf32>
    %264 = vector.shape_cast %263 : vector<8xf32> to vector<8x1xf32>
    %265 = vector.broadcast %264 : vector<8x1xf32> to vector<8x8xf32>
    %266 = arith.cmpf oeq, %262, %265 : vector<8x8xf32>
    %c8_i32_83 = arith.constant 8 : i32
    %267 = vector.broadcast %c8_i32_83 : i32 to vector<8x8xi32>
    %268 = arith.select %266, %188, %267 : vector<8x8xi1>, vector<8x8xi32>
    %cst_84 = arith.constant dense<2147483647> : vector<8xi32>
    %269 = vector.multi_reduction <minsi>, %268, %cst_84 [1] : vector<8x8xi32> to vector<8xi32>
    %270 = vector.shape_cast %269 : vector<8xi32> to vector<8x1xi32>
    %271 = arith.addf %264, %208 : vector<8x1xf32>
    %272 = vector.broadcast %271 : vector<8x1xf32> to vector<8x8xf32>
    %273 = arith.addf %272, %184 : vector<8x8xf32>
    %cst_85 = arith.constant dense<0xFF800000> : vector<8xf32>
    %274 = vector.multi_reduction <maximumf>, %273, %cst_85 [0] : vector<8x8xf32> to vector<8xf32>
    %275 = vector.shape_cast %274 : vector<8xf32> to vector<1x8xf32>
    %276 = vector.broadcast %275 : vector<1x8xf32> to vector<8x8xf32>
    %277 = arith.cmpf oeq, %273, %276 : vector<8x8xf32>
    %c8_i32_86 = arith.constant 8 : i32
    %278 = vector.broadcast %c8_i32_86 : i32 to vector<8x8xi32>
    %279 = arith.select %277, %187, %278 : vector<8x8xi1>, vector<8x8xi32>
    %cst_87 = arith.constant dense<2147483647> : vector<8xi32>
    %280 = vector.multi_reduction <minsi>, %279, %cst_87 [0] : vector<8x8xi32> to vector<8xi32>
    %281 = vector.shape_cast %280 : vector<8xi32> to vector<1x8xi32>
    %282 = arith.addf %275, %193 : vector<1x8xf32>
    %283 = vector.broadcast %282 : vector<1x8xf32> to vector<8x8xf32>
    %284 = arith.addf %283, %186 : vector<8x8xf32>
    %cst_88 = arith.constant dense<0xFF800000> : vector<8xf32>
    %285 = vector.multi_reduction <maximumf>, %284, %cst_88 [1] : vector<8x8xf32> to vector<8xf32>
    %286 = vector.shape_cast %285 : vector<8xf32> to vector<8x1xf32>
    %287 = vector.broadcast %286 : vector<8x1xf32> to vector<8x8xf32>
    %288 = arith.cmpf oeq, %284, %287 : vector<8x8xf32>
    %c8_i32_89 = arith.constant 8 : i32
    %289 = vector.broadcast %c8_i32_89 : i32 to vector<8x8xi32>
    %290 = arith.select %288, %188, %289 : vector<8x8xi1>, vector<8x8xi32>
    %cst_90 = arith.constant dense<2147483647> : vector<8xi32>
    %291 = vector.multi_reduction <minsi>, %290, %cst_90 [1] : vector<8x8xi32> to vector<8xi32>
    %292 = vector.shape_cast %291 : vector<8xi32> to vector<8x1xi32>
    %293 = arith.addf %286, %215 : vector<8x1xf32>
    %294 = vector.broadcast %293 : vector<8x1xf32> to vector<8x8xf32>
    %295 = arith.addf %294, %184 : vector<8x8xf32>
    %cst_91 = arith.constant dense<0xFF800000> : vector<8xf32>
    %296 = vector.multi_reduction <maximumf>, %295, %cst_91 [0] : vector<8x8xf32> to vector<8xf32>
    %297 = vector.shape_cast %296 : vector<8xf32> to vector<1x8xf32>
    %298 = vector.broadcast %297 : vector<1x8xf32> to vector<8x8xf32>
    %299 = arith.cmpf oeq, %295, %298 : vector<8x8xf32>
    %c8_i32_92 = arith.constant 8 : i32
    %300 = vector.broadcast %c8_i32_92 : i32 to vector<8x8xi32>
    %301 = arith.select %299, %187, %300 : vector<8x8xi1>, vector<8x8xi32>
    %cst_93 = arith.constant dense<2147483647> : vector<8xi32>
    %302 = vector.multi_reduction <minsi>, %301, %cst_93 [0] : vector<8x8xi32> to vector<8xi32>
    %303 = vector.shape_cast %302 : vector<8xi32> to vector<1x8xi32>
    %304 = arith.addf %297, %194 : vector<1x8xf32>
    %305 = vector.broadcast %304 : vector<1x8xf32> to vector<8x8xf32>
    %306 = arith.addf %305, %186 : vector<8x8xf32>
    %cst_94 = arith.constant dense<0xFF800000> : vector<8xf32>
    %307 = vector.multi_reduction <maximumf>, %306, %cst_94 [1] : vector<8x8xf32> to vector<8xf32>
    %308 = vector.shape_cast %307 : vector<8xf32> to vector<8x1xf32>
    %309 = vector.broadcast %308 : vector<8x1xf32> to vector<8x8xf32>
    %310 = arith.cmpf oeq, %306, %309 : vector<8x8xf32>
    %c8_i32_95 = arith.constant 8 : i32
    %311 = vector.broadcast %c8_i32_95 : i32 to vector<8x8xi32>
    %312 = arith.select %310, %188, %311 : vector<8x8xi1>, vector<8x8xi32>
    %cst_96 = arith.constant dense<2147483647> : vector<8xi32>
    %313 = vector.multi_reduction <minsi>, %312, %cst_96 [1] : vector<8x8xi32> to vector<8xi32>
    %314 = vector.shape_cast %313 : vector<8xi32> to vector<8x1xi32>
    %315 = arith.addf %308, %222 : vector<8x1xf32>
    %316 = tpu.concatenate %237, %259, %281, %303 in 0 : vector<1x8xi32>, vector<1x8xi32>, vector<1x8xi32>, vector<1x8xi32> -> vector<4x8xi32>
    %c0_97 = arith.constant 0 : index
    %c0_98 = arith.constant 0 : index
    %317 = vector.load %arg8[%c0_97, %c0_98] : memref<4x8xi32, #tpu.memory_space<vmem>>, vector<4x8xi32>
    tpu.vector_store %arg8[%c0_97, %c0_98], %316 {strides = array<i32>} : memref<4x8xi32, #tpu.memory_space<vmem>>, vector<4x8xi32>,
    %318 = tpu.concatenate %248, %270, %292, %314 in 1 : vector<8x1xi32>, vector<8x1xi32>, vector<8x1xi32>, vector<8x1xi32> -> vector<8x4xi32>
    %c0_99 = arith.constant 0 : index
    %c0_100 = arith.constant 0 : index
    %319 = vector.load %arg9[%c0_99, %c0_100] : memref<8x4xi32, #tpu.memory_space<vmem>>, vector<8x4xi32>
    tpu.vector_store %arg9[%c0_99, %c0_100], %318 {strides = array<i32>} : memref<8x4xi32, #tpu.memory_space<vmem>>, vector<8x4xi32>,
    %c0_101 = arith.constant 0 : index
    %c0_102 = arith.constant 0 : index
    %320 = vector.load %arg7[%c0_101, %c0_102] : memref<8x1xf32, #tpu.memory_space<vmem>>, vector<8x1xf32>
    %321 = arith.addf %315, %320 : vector<8x1xf32>
    %c0_103 = arith.constant 0 : index
    %c0_104 = arith.constant 0 : index
    %322 = vector.load %arg10[%c0_103, %c0_104] : memref<8x1xf32, #tpu.memory_space<vmem>>, vector<8x1xf32>
    tpu.vector_store %arg10[%c0_103, %c0_104], %321 {strides = array<i32>} : memref<8x1xf32, #tpu.memory_space<vmem>>, vector<8x1xf32>,
    return
  }
}

</mosaic_0001>

<llo_original>
// kernel: custom-call.2
$region0: #{custom-call.2}
  %s0 = inlined_call_operand.vmem [shape: s32[8], index: 0, kind: output, shape index: {}]

// kernel: bilstm_crf_forward.1
$region0: #{bilstm_crf_forward.1}
  #allocation0 [shape = 'u32[]', space=smem, size = 0x4, offset = 0x4, fixed_abs, tag = 'smem constant byte address 0x4 - core index']
  #allocation1 [shape = 'u32[144,128]{1,0:T(1,128)}', space=vmem, size = 0x12000, scoped, tag = 'internal scratch']
  #allocation2 [shape = 'f32[8,128]{1,0:T(8,128)}', space=vmem, size = 0x1000, scoped, tag = 'scratch operand']
  %s0 = inlined_call_operand.vmem [shape: f32[8,64], index: 0, kind: input, shape index: {}]
  %s1 = inlined_call_operand.vmem [shape: f32[128,256], index: 1, kind: input, shape index: {}]
  %s2 = inlined_call_operand.vmem [shape: f32[1,256], index: 2, kind: input, shape index: {}]
  %s3 = inlined_call_operand.vmem [shape: f32[2,64], index: 3, kind: input, shape index: {}]
  %s4 = inlined_call_operand.vmem [shape: f32[128,8], index: 4, kind: input, shape index: {}]
  %s5 = inlined_call_operand.vmem [shape: f32[1,8], index: 5, kind: input, shape index: {}]
  %s6 = inlined_call_operand.vmem [shape: f32[2,8,8], index: 6, kind: input, shape index: {}]
  %s7 = inlined_call_operand.vmem [shape: f32[8,1], index: 7, kind: input, shape index: {}]
  %s8 = inlined_call_operand.vmem [shape: s32[4,8], index: 8, kind: output, shape index: {0}]
  %s9 = inlined_call_operand.vmem [shape: s32[8,4], index: 9, kind: output, shape index: {1}]
  %s10 = inlined_call_operand.vmem [shape: f32[8,1], index: 10, kind: output, shape index: {2}]
  %11 = xla_tuple %s8, %s9, %s10
  %s12 = sld [smem:[#allocation0]]
  $region58: #{bilstm_crf_forward.1} parent=0
    _
  %s14 = ssub.s32 1, %s12
  %s15 = scalar_select 0, %s14, %s12
  // Predicated region
  $region2: #{bilstm_crf_forward.1} parent=0 // pred_check
    _
  $region3: #{bilstm_crf_forward.1} parent=0 // pred_check_branch
    %17 = sbr.rel (0) target = $region5
  $region4: #{bilstm_crf_forward.1} parent=0 // pred_region
    _
  $region5: #{bilstm_crf_forward.1} parent=0 // pred_fallthru
    _
  // Predicated region
  $region6: #{bilstm_crf_forward.1} parent=0 // pred_check
    _
  $region7: #{bilstm_crf_forward.1} parent=0 // pred_check_branch
    %19 = sbr.rel (0) target = $region9
  $region8: #{bilstm_crf_forward.1} parent=0 // pred_region
    _
  $region9: #{bilstm_crf_forward.1} parent=0 // pred_fallthru
    _
  // Predicated region
  $region10: #{bilstm_crf_forward.1} parent=0 // pred_check
    _
  $region11: #{bilstm_crf_forward.1} parent=0 // pred_check_branch
    %21 = sbr.rel (0) target = $region13
  $region12: #{bilstm_crf_forward.1} parent=0 // pred_region
    _
  $region13: #{bilstm_crf_forward.1} parent=0 // pred_fallthru
    _
  // Predicated region
  $region14: #{bilstm_crf_forward.1} parent=0 // pred_check
    _
  $region15: #{bilstm_crf_forward.1} parent=0 // pred_check_branch
    %23 = sbr.rel (0) target = $region17
  $region16: #{bilstm_crf_forward.1} parent=0 // pred_region
    _
  $region17: #{bilstm_crf_forward.1} parent=0 // pred_fallthru
    _
  // Predicated region
  $region18: #{bilstm_crf_forward.1} parent=0 // pred_check
    _
  $region19: #{bilstm_crf_forward.1} parent=0 // pred_check_branch
    %25 = sbr.rel (0) target = $region21
  $region20: #{bilstm_crf_forward.1} parent=0 // pred_region
    _
  $region21: #{bilstm_crf_forward.1} parent=0 // pred_fallthru
    _
  // Predicated region
  $region22: #{bilstm_crf_forward.1} parent=0 // pred_check
    _
  $region23: #{bilstm_crf_forward.1} parent=0 // pred_check_branch
    %27 = sbr.rel (0) target = $region25
  $region24: #{bilstm_crf_forward.1} parent=0 // pred_region
    _
  $region25: #{bilstm_crf_forward.1} parent=0 // pred_fallthru
    _
  // Predicated region
  $region26: #{bilstm_crf_forward.1} parent=0 // pred_check
    _
  $region27: #{bilstm_crf_forward.1} parent=0 // pred_check_branch
    %29 = sbr.rel (0) target = $region29
  $region28: #{bilstm_crf_forward.1} parent=0 // pred_region
    _
  $region29: #{bilstm_crf_forward.1} parent=0 // pred_fallthru
    _
  // Predicated region
  $region30: #{bilstm_crf_forward.1} parent=0 // pred_check
    _
  $region31: #{bilstm_crf_forward.1} parent=0 // pred_check_branch
    %31 = sbr.rel (0) target = $region33
  $region32: #{bilstm_crf_forward.1} parent=0 // pred_region
    _
  $region33: #{bilstm_crf_forward.1} parent=0 // pred_fallthru
    _
  %v32 = vld [vmem:[%s0] sm:$0xff]
  %v33 = vld [vmem:[%s1] sm:$0xff]
  %v34 = vld [vmem:[%s1 + $0x8] sm:$0xff]
  %v35 = vld [vmem:[%s1 + $0x10] sm:$0xff]
  %v36 = vld [vmem:[%s1 + $0x18] sm:$0xff]
  %v37 = vld [vmem:[%s1 + $0x20] sm:$0xff]
  %v38 = vld [vmem:[%s1 + $0x28] sm:$0xff]
  %v39 = vld [vmem:[%s1 + $0x30] sm:$0xff]
  %v40 = vld [vmem:[%s1 + $0x38] sm:$0xff]
  %v41 = vld [vmem:[%s1 + $0x40] sm:$0xff]
  %v42 = vld [vmem:[%s1 + $0x48] sm:$0xff]
  %v43 = vld [vmem:[%s1 + $0x50] sm:$0xff]
  %v44 = vld [vmem:[%s1 + $0x58] sm:$0xff]
  %v45 = vld [vmem:[%s1 + $0x60] sm:$0xff]
  %v46 = vld [vmem:[%s1 + $0x68] sm:$0xff]
  %v47 = vld [vmem:[%s1 + $0x70] sm:$0xff]
  %v48 = vld [vmem:[%s1 + $0x78] sm:$0xff]
  %v49 = vld [vmem:[%s2] sm:$0x3]
  %v51 = vlaneseq
  %v52 = vshrl.u32 %v51, 7
  %v53 = vsub.s32 0, %v52
  %v54 = vrot.slane %v49, %v53
  %v55 = vlaneseq
  %v56 = vshrl.u32 %v55, 7
  %v57 = vsub.s32 1, %v56
  %v58 = vrot.slane %v49, %v57
  %vm61 = vcmask 523264
  %v63 = vsel %vm61, %v32, 0
  %65 = vmatprep.subr.mxu0 %v34
  %66 = vmatpush1.msra.mxu0 %v33
  %67 = vmatprep.subr.mxu0 %v36
  %68 = vmatpush1.msra.mxu0 %v35
  %69 = vmatprep.subr.mxu0 %v38
  %70 = vmatpush1.msra.mxu0 %v37
  %71 = vmatprep.subr.mxu0 %v40
  %72 = vmatpush1.msra.mxu0 %v39
  %73 = vmatprep.subr.mxu0 %v42
  %74 = vmatpush1.msra.mxu0 %v41
  %75 = vmatprep.subr.mxu0 %v44
  %76 = vmatpush1.msra.mxu0 %v43
  %77 = vmatprep.subr.mxu0 %v46
  %78 = vmatpush1.msra.mxu0 %v45
  %79 = vmatprep.subr.mxu0 %v48
  %80 = vmatpush1.msra.mxu0 %v47
  %81 = vmatprep.subr.mxu0 0.0
  %82 = vmatpush1.msra.mxu0 0.0
  %83 = vmatprep.subr.mxu0 0.0
  %84 = vmatpush1.msra.mxu0 0.0
  %85 = vmatprep.subr.mxu0 0.0
  %86 = vmatpush1.msra.mxu0 0.0
  %87 = vmatprep.subr.mxu0 0.0
  %88 = vmatpush1.msra.mxu0 0.0
  %89 = vmatprep.subr.mxu0 0.0
  %90 = vmatpush1.msra.mxu0 0.0
  %91 = vmatprep.subr.mxu0 0.0
  %92 = vmatpush1.msra.mxu0 0.0
  %93 = vmatprep.subr.mxu0 0.0
  %94 = vmatpush1.msra.mxu0 0.0
  %95 = vmatprep.subr.mxu0 0.0
  %96 = vmatpush1.msra.mxu0 0.0
  %97 = vmatprep.subr.mxu0 0.0
  %98 = vmatpush1.msra.mxu0 0.0
  %99 = vmatprep.subr.mxu0 0.0
  %100 = vmatpush1.msra.mxu0 0.0
  %101 = vmatprep.subr.mxu0 0.0
  %102 = vmatpush1.msra.mxu0 0.0
  %103 = vmatprep.subr.mxu0 0.0
  %104 = vmatpush1.msra.mxu0 0.0
  %105 = vmatprep.subr.mxu0 0.0
  %106 = vmatpush1.msra.mxu0 0.0
  %107 = vmatprep.subr.mxu0 0.0
  %108 = vmatpush1.msra.mxu0 0.0
  %109 = vmatprep.subr.mxu0 0.0
  %110 = vmatpush1.msra.mxu0 0.0
  %111 = vmatprep.subr.mxu0 0.0
  %112 = vmatpush1.msra.mxu0 0.0
  %113 = vmatprep.subr.mxu0 0.0
  %114 = vmatpush1.msra.mxu0 0.0
  %115 = vmatprep.subr.mxu0 0.0
  %116 = vmatpush1.msra.mxu0 0.0
  %117 = vmatprep.subr.mxu0 0.0
  %118 = vmatpush1.msra.mxu0 0.0
  %119 = vmatprep.subr.mxu0 0.0
  %120 = vmatpush1.msra.mxu0 0.0
  %121 = vmatprep.subr.mxu0 0.0
  %122 = vmatpush1.msra.mxu0 0.0
  %123 = vmatprep.subr.mxu0 0.0
  %124 = vmatpush1.msra.mxu0 0.0
  %125 = vmatprep.subr.mxu0 0.0
  %126 = vmatpush1.msra.mxu0 0.0
  %127 = vmatprep.subr.mxu0 0.0
  %128 = vmatpush1.msra.mxu0 0.0
  %129 = vmatprep.mubr.f32.mxu0 0.0
  %130 = vmatmul.mubr.f32.gmra.mrb[0].mxu0 %v63
  %v131 = vpop.f32.mrb[0].mxu0
  %v132 = vadd.f32 %v54, %v131
  %v133 = vpop.f32.mrb[0].mxu0
  %v134 = vadd.f32 %v58, %v133
  %135 = vdwg.mxu0
  %v136 = vld [vmem:[%s1 + $0x80] sm:$0xff]
  %v137 = vld [vmem:[%s1 + $0x88] sm:$0xff]
  %v138 = vld [vmem:[%s1 + $0x90] sm:$0xff]
  %v139 = vld [vmem:[%s1 + $0x98] sm:$0xff]
  %v140 = vld [vmem:[%s1 + $0xa0] sm:$0xff]
  %v141 = vld [vmem:[%s1 + $0xa8] sm:$0xff]
  %v142 = vld [vmem:[%s1 + $0xb0] sm:$0xff]
  %v143 = vld [vmem:[%s1 + $0xb8] sm:$0xff]
  %v144 = vld [vmem:[%s1 + $0xc0] sm:$0xff]
  %v145 = vld [vmem:[%s1 + $0xc8] sm:$0xff]
  %v146 = vld [vmem:[%s1 + $0xd0] sm:$0xff]
  %v147 = vld [vmem:[%s1 + $0xd8] sm:$0xff]
  %v148 = vld [vmem:[%s1 + $0xe0] sm:$0xff]
  %v149 = vld [vmem:[%s1 + $0xe8] sm:$0xff]
  %v150 = vld [vmem:[%s1 + $0xf0] sm:$0xff]
  %v151 = vld [vmem:[%s1 + $0xf8] sm:$0xff]
  %v152 = vld [vmem:[%s3] sm:$0x1]
  %v153 = vld [vmem:[%s3 + $0x1] sm:$0x1]
  %v155 = vsel %vm61, %v152, 0
  %157 = vmatprep.subr.mxu0 %v137
  %158 = vmatpush1.msra.mxu0 %v136
  %159 = vmatprep.subr.mxu0 %v139
  %160 = vmatpush1.msra.mxu0 %v138
  %161 = vmatprep.subr.mxu0 %v141
  %162 = vmatpush1.msra.mxu0 %v140
  %163 = vmatprep.subr.mxu0 %v143
  %164 = vmatpush1.msra.mxu0 %v142
  %165 = vmatprep.subr.mxu0 %v145
  %166 = vmatpush1.msra.mxu0 %v144
  %167 = vmatprep.subr.mxu0 %v147
  %168 = vmatpush1.msra.mxu0 %v146
  %169 = vmatprep.subr.mxu0 %v149
  %170 = vmatpush1.msra.mxu0 %v148
  %171 = vmatprep.subr.mxu0 %v151
  %172 = vmatpush1.msra.mxu0 %v150
  %173 = vmatprep.subr.mxu0 0.0
  %174 = vmatpush1.msra.mxu0 0.0
  %175 = vmatprep.subr.mxu0 0.0
  %176 = vmatpush1.msra.mxu0 0.0
  %177 = vmatprep.subr.mxu0 0.0
  %178 = vmatpush1.msra.mxu0 0.0
  %179 = vmatprep.subr.mxu0 0.0
  %180 = vmatpush1.msra.mxu0 0.0
  %181 = vmatprep.subr.mxu0 0.0
  %182 = vmatpush1.msra.mxu0 0.0
  %183 = vmatprep.subr.mxu0 0.0
  %184 = vmatpush1.msra.mxu0 0.0
  %185 = vmatprep.subr.mxu0 0.0
  %186 = vmatpush1.msra.mxu0 0.0
  %187 = vmatprep.subr.mxu0 0.0
  %188 = vmatpush1.msra.mxu0 0.0
  %189 = vmatprep.subr.mxu0 0.0
  %190 = vmatpush1.msra.mxu0 0.0
  %191 = vmatprep.subr.mxu0 0.0
  %192 = vmatpush1.msra.mxu0 0.0
  %193 = vmatprep.subr.mxu0 0.0
  %194 = vmatpush1.msra.mxu0 0.0
  %195 = vmatprep.subr.mxu0 0.0
  %196 = vmatpush1.msra.mxu0 0.0
  %197 = vmatprep.subr.mxu0 0.0
  %198 = vmatpush1.msra.mxu0 0.0
  %199 = vmatprep.subr.mxu0 0.0
  %200 = vmatpush1.msra.mxu0 0.0
  %201 = vmatprep.subr.mxu0 0.0
  %202 = vmatpush1.msra.mxu0 0.0
  %203 = vmatprep.subr.mxu0 0.0
  %204 = vmatpush1.msra.mxu0 0.0
  %205 = vmatprep.subr.mxu0 0.0
  %206 = vmatpush1.msra.mxu0 0.0
  %207 = vmatprep.subr.mxu0 0.0
  %208 = vmatpush1.msra.mxu0 0.0
  %209 = vmatprep.subr.mxu0 0.0
  %210 = vmatpush1.msra.mxu0 0.0
  %211 = vmatprep.subr.mxu0 0.0
  %212 = vmatpush1.msra.mxu0 0.0
  %213 = vmatprep.subr.mxu0 0.0
  %214 = vmatpush1.msra.mxu0 0.0
  %215 = vmatprep.subr.mxu0 0.0
  %216 = vmatpush1.msra.mxu0 0.0
  %217 = vmatprep.subr.mxu0 0.0
  %218 = vmatpush1.msra.mxu0 0.0
  %219 = vmatprep.subr.mxu0 0.0
  %220 = vmatpush1.msra.mxu0 0.0
  %221 = vmatprep.mubr.f32.mxu0 0.0
  %222 = vmatmul.mubr.f32.gmra.mrb[0].mxu0 %v155
  %v223 = vpop.f32.mrb[0].mxu0
  %v224 = vadd.f32 0.0, %v223
  %v225 = vpop.f32.mrb[0].mxu0
  %v226 = vadd.f32 0.0, %v225
  %227 = vdwg.mxu0
  %v228 = vadd.f32 %v132, %v224
  %v229 = vadd.f32 %v134, %v226
  %v230 = vxor.u32 %v228, 2147483648
  %v231 = vxor.u32 %v229, 2147483648
  %v232 = vmul.f32 %v230, 1.442695
  %v233 = vpow.pop %v232
  %v234 = vmul.f32 %v231, 1.442695
  %v235 = vpow.pop %v234
  %v236 = vadd.f32 %v233, 1.0
  %v237 = vadd.f32 %v235, 1.0
  %v238 = vrcp.pop %v236
  %v239 = vmul.f32 1.0, %v238
  %v240 = vrcp.pop %v237
  %v241 = vmul.f32 1.0, %v240
  %v242 = vtanh.pop %v229
  %244 = vrot.lane.b32.xlu0 %v153, 64
  %v245 = vpop.permute.xlu0 %244
  %v247 = vmul.f32 %v239, %v245
  %249 = vrot.lane.b32.xlu0 %v242, 64
  %v250 = vpop.permute.xlu0 %249
  %v252 = vmul.f32 %v239, %v250
  %254 = vrot.lane.b32.xlu0 %v252, 64
  %v255 = vpop.permute.xlu0 %254
  %v257 = vadd.f32 %v247, %v255
  %v258 = vtanh.pop %v257
  %260 = vrot.lane.b32.xlu0 %v258, 64
  %v261 = vpop.permute.xlu0 %260
  %v263 = vmul.f32 %v241, %v261
  %vm264 = vcmask 516096
  %265 = vst.msk [vmem:[#allocation2] sm:$0x1] %vm264, %v263
  %267 = vrot.lane.b32.xlu0 %v263, 64
  %v268 = vpop.permute.xlu0 %267
  %vm270 = vcmask 1040896
  %271 = vst.msk [vmem:[#allocation2 + $0x7] sm:$0x1] %vm270, %v268
  %v272 = vsel %vm61, %v263, 0
  %274 = vmatprep.subr.mxu0 %v137
  %275 = vmatpush1.msra.mxu0 %v136
  %276 = vmatprep.subr.mxu0 %v139
  %277 = vmatpush1.msra.mxu0 %v138
  %278 = vmatprep.subr.mxu0 %v141
  %279 = vmatpush1.msra.mxu0 %v140
  %280 = vmatprep.subr.mxu0 %v143
  %281 = vmatpush1.msra.mxu0 %v142
  %282 = vmatprep.subr.mxu0 %v145
  %283 = vmatpush1.msra.mxu0 %v144
  %284 = vmatprep.subr.mxu0 %v147
  %285 = vmatpush1.msra.mxu0 %v146
  %286 = vmatprep.subr.mxu0 %v149
  %287 = vmatpush1.msra.mxu0 %v148
  %288 = vmatprep.subr.mxu0 %v151
  %289 = vmatpush1.msra.mxu0 %v150
  %290 = vmatprep.subr.mxu0 0.0
  %291 = vmatpush1.msra.mxu0 0.0
  %292 = vmatprep.subr.mxu0 0.0
  %293 = vmatpush1.msra.mxu0 0.0
  %294 = vmatprep.subr.mxu0 0.0
  %295 = vmatpush1.msra.mxu0 0.0
  %296 = vmatprep.subr.mxu0 0.0
  %297 = vmatpush1.msra.mxu0 0.0
  %298 = vmatprep.subr.mxu0 0.0
  %299 = vmatpush1.msra.mxu0 0.0
  %300 = vmatprep.subr.mxu0 0.0
  %301 = vmatpush1.msra.mxu0 0.0
  %302 = vmatprep.subr.mxu0 0.0
  %303 = vmatpush1.msra.mxu0 0.0
  %304 = vmatprep.subr.mxu0 0.0
  %305 = vmatpush1.msra.mxu0 0.0
  %306 = vmatprep.subr.mxu0 0.0
  %307 = vmatpush1.msra.mxu0 0.0
  %308 = vmatprep.subr.mxu0 0.0
  %309 = vmatpush1.msra.mxu0 0.0
  %310 = vmatprep.subr.mxu0 0.0
  %311 = vmatpush1.msra.mxu0 0.0
  %312 = vmatprep.subr.mxu0 0.0
  %313 = vmatpush1.msra.mxu0 0.0
  %314 = vmatprep.subr.mxu0 0.0
  %315 = vmatpush1.msra.mxu0 0.0
  %316 = vmatprep.subr.mxu0 0.0
  %317 = vmatpush1.msra.mxu0 0.0
  %318 = vmatprep.subr.mxu0 0.0
  %319 = vmatpush1.msra.mxu0 0.0
  %320 = vmatprep.subr.mxu0 0.0
  %321 = vmatpush1.msra.mxu0 0.0
  %322 = vmatprep.subr.mxu0 0.0
  %323 = vmatpush1.msra.mxu0 0.0
  %324 = vmatprep.subr.mxu0 0.0
  %325 = vmatpush1.msra.mxu0 0.0
  %326 = vmatprep.subr.mxu0 0.0
  %327 = vmatpush1.msra.mxu0 0.0
  %328 = vmatprep.subr.mxu0 0.0
  %329 = vmatpush1.msra.mxu0 0.0
  %330 = vmatprep.subr.mxu0 0.0
  %331 = vmatpush1.msra.mxu0 0.0
  %332 = vmatprep.subr.mxu0 0.0
  %333 = vmatpush1.msra.mxu0 0.0
  %334 = vmatprep.subr.mxu0 0.0
  %335 = vmatpush1.msra.mxu0 0.0
  %336 = vmatprep.subr.mxu0 0.0
  %337 = vmatpush1.msra.mxu0 0.0
  %338 = vmatprep.mubr.f32.mxu0 0.0
  %339 = vmatmul.mubr.f32.gmra.mrb[0].mxu0 %v272
  %v340 = vpop.f32.mrb[0].mxu0
  %v341 = vadd.f32 0.0, %v340
  %v342 = vpop.f32.mrb[0].mxu0
  %v343 = vadd.f32 0.0, %v342
  %344 = vdwg.mxu0
  %v347 = vrot.slane %v341, 7
  %v348 = vrot.slane %v343, 7
  %v351 = vadd.f32 %v132, %v347
  %v352 = vadd.f32 %v134, %v348
  %v353 = vxor.u32 %v351, 2147483648
  %v354 = vxor.u32 %v352, 2147483648
  %v355 = vmul.f32 %v353, 1.442695
  %v356 = vpow.pop %v355
  %v357 = vmul.f32 %v354, 1.442695
  %v358 = vpow.pop %v357
  %v359 = vadd.f32 %v356, 1.0
  %v360 = vadd.f32 %v358, 1.0
  %v361 = vrcp.pop %v359
  %v362 = vmul.f32 1.0, %v361
  %v363 = vrcp.pop %v360
  %v364 = vmul.f32 1.0, %v363
  %v365 = vtanh.pop %v352
  %v367 = vrot.slane %v257, 7
  %v369 = vmul.f32 %v362, %v367
  %371 = vrot.lane.b32.xlu0 %v365, 64
  %v372 = vpop.permute.xlu0 %371
  %v374 = vmul.f32 %v362, %v372
  %376 = vrot.lane.b32.xlu0 %v374, 64
  %v377 = vpop.permute.xlu0 %376
  %v379 = vadd.f32 %v369, %v377
  %v380 = vtanh.pop %v379
  %382 = vrot.lane.b32.xlu0 %v380, 64
  %v383 = vpop.permute.xlu0 %382
  %v385 = vmul.f32 %v364, %v383
  %vm386 = vcmask 517121
  %387 = vst.msk [vmem:[#allocation2] sm:$0x2] %vm386, %v385
  %389 = vrot.lane.b32.xlu0 %v385, 64
  %v390 = vpop.permute.xlu0 %389
  %vm392 = vcmask 1041921
  %393 = vst.msk [vmem:[#allocation2 + $0x5] sm:$0x2] %vm392, %v390
  %v394 = vrot.slane %v385, 1
  %v395 = vsel %vm61, %v394, 0
  %397 = vmatprep.subr.mxu0 %v137
  %398 = vmatpush1.msra.mxu0 %v136
  %399 = vmatprep.subr.mxu0 %v139
  %400 = vmatpush1.msra.mxu0 %v138
  %401 = vmatprep.subr.mxu0 %v141
  %402 = vmatpush1.msra.mxu0 %v140
  %403 = vmatprep.subr.mxu0 %v143
  %404 = vmatpush1.msra.mxu0 %v142
  %405 = vmatprep.subr.mxu0 %v145
  %406 = vmatpush1.msra.mxu0 %v144
  %407 = vmatprep.subr.mxu0 %v147
  %408 = vmatpush1.msra.mxu0 %v146
  %409 = vmatprep.subr.mxu0 %v149
  %410 = vmatpush1.msra.mxu0 %v148
  %411 = vmatprep.subr.mxu0 %v151
  %412 = vmatpush1.msra.mxu0 %v150
  %413 = vmatprep.subr.mxu0 0.0
  %414 = vmatpush1.msra.mxu0 0.0
  %415 = vmatprep.subr.mxu0 0.0
  %416 = vmatpush1.msra.mxu0 0.0
  %417 = vmatprep.subr.mxu0 0.0
  %418 = vmatpush1.msra.mxu0 0.0
  %419 = vmatprep.subr.mxu0 0.0
  %420 = vmatpush1.msra.mxu0 0.0
  %421 = vmatprep.subr.mxu0 0.0
  %422 = vmatpush1.msra.mxu0 0.0
  %423 = vmatprep.subr.mxu0 0.0
  %424 = vmatpush1.msra.mxu0 0.0
  %425 = vmatprep.subr.mxu0 0.0
  %426 = vmatpush1.msra.mxu0 0.0
  %427 = vmatprep.subr.mxu0 0.0
  %428 = vmatpush1.msra.mxu0 0.0
  %429 = vmatprep.subr.mxu0 0.0
  %430 = vmatpush1.msra.mxu0 0.0
  %431 = vmatprep.subr.mxu0 0.0
  %432 = vmatpush1.msra.mxu0 0.0
  %433 = vmatprep.subr.mxu0 0.0
  %434 = vmatpush1.msra.mxu0 0.0
  %435 = vmatprep.subr.mxu0 0.0
  %436 = vmatpush1.msra.mxu0 0.0
  %437 = vmatprep.subr.mxu0 0.0
  %438 = vmatpush1.msra.mxu0 0.0
  %439 = vmatprep.subr.mxu0 0.0
  %440 = vmatpush1.msra.mxu0 0.0
  %441 = vmatprep.subr.mxu0 0.0
  %442 = vmatpush1.msra.mxu0 0.0
  %443 = vmatprep.subr.mxu0 0.0
  %444 = vmatpush1.msra.mxu0 0.0
  %445 = vmatprep.subr.mxu0 0.0
  %446 = vmatpush1.msra.mxu0 0.0
  %447 = vmatprep.subr.mxu0 0.0
  %448 = vmatpush1.msra.mxu0 0.0
  %449 = vmatprep.subr.mxu0 0.0
  %450 = vmatpush1.msra.mxu0 0.0
  %451 = vmatprep.subr.mxu0 0.0
  %452 = vmatpush1.msra.mxu0 0.0
  %453 = vmatprep.subr.mxu0 0.0
  %454 = vmatpush1.msra.mxu0 0.0
  %455 = vmatprep.subr.mxu0 0.0
  %456 = vmatpush1.msra.mxu0 0.0
  %457 = vmatprep.subr.mxu0 0.0
  %458 = vmatpush1.msra.mxu0 0.0
  %459 = vmatprep.subr.mxu0 0.0
  %460 = vmatpush1.msra.mxu0 0.0
  %461 = vmatprep.mubr.f32.mxu0 0.0
  %462 = vmatmul.mubr.f32.gmra.mrb[0].mxu0 %v395
  %v463 = vpop.f32.mrb[0].mxu0
  %v464 = vadd.f32 0.0, %v463
  %v465 = vpop.f32.mrb[0].mxu0
  %v466 = vadd.f32 0.0, %v465
  %467 = vdwg.mxu0
  %v470 = vrot.slane %v464, 6
  %v471 = vrot.slane %v466, 6
  %v474 = vadd.f32 %v132, %v470
  %v475 = vadd.f32 %v134, %v471
  %v476 = vxor.u32 %v474, 2147483648
  %v477 = vxor.u32 %v475, 2147483648
  %v478 = vmul.f32 %v476, 1.442695
  %v479 = vpow.pop %v478
  %v480 = vmul.f32 %v477, 1.442695
  %v481 = vpow.pop %v480
  %v482 = vadd.f32 %v479, 1.0
  %v483 = vadd.f32 %v481, 1.0
  %v484 = vrcp.pop %v482
  %v485 = vmul.f32 1.0, %v484
  %v486 = vrcp.pop %v483
  %v487 = vmul.f32 1.0, %v486
  %v488 = vtanh.pop %v475
  %v490 = vrot.slane %v379, 7
  %v492 = vmul.f32 %v485, %v490
  %494 = vrot.lane.b32.xlu0 %v488, 64
  %v495 = vpop.permute.xlu0 %494
  %v497 = vmul.f32 %v485, %v495
  %499 = vrot.lane.b32.xlu0 %v497, 64
  %v500 = vpop.permute.xlu0 %499
  %v502 = vadd.f32 %v492, %v500
  %v503 = vtanh.pop %v502
  %505 = vrot.lane.b32.xlu0 %v503, 64
  %v506 = vpop.permute.xlu0 %505
  %v508 = vmul.f32 %v487, %v506
  %vm509 = vcmask 518146
  %510 = vst.msk [vmem:[#allocation2] sm:$0x4] %vm509, %v508
  %512 = vrot.lane.b32.xlu0 %v508, 64
  %v513 = vpop.permute.xlu0 %512
  %vm515 = vcmask 1042946
  %516 = vst.msk [vmem:[#allocation2 + $0x3] sm:$0x4] %vm515, %v513
  %v517 = vrot.slane %v508, 2
  %v518 = vsel %vm61, %v517, 0
  %520 = vmatprep.subr.mxu0 %v137
  %521 = vmatpush1.msra.mxu0 %v136
  %522 = vmatprep.subr.mxu0 %v139
  %523 = vmatpush1.msra.mxu0 %v138
  %524 = vmatprep.subr.mxu0 %v141
  %525 = vmatpush1.msra.mxu0 %v140
  %526 = vmatprep.subr.mxu0 %v143
  %527 = vmatpush1.msra.mxu0 %v142
  %528 = vmatprep.subr.mxu0 %v145
  %529 = vmatpush1.msra.mxu0 %v144
  %530 = vmatprep.subr.mxu0 %v147
  %531 = vmatpush1.msra.mxu0 %v146
  %532 = vmatprep.subr.mxu0 %v149
  %533 = vmatpush1.msra.mxu0 %v148
  %534 = vmatprep.subr.mxu0 %v151
  %535 = vmatpush1.msra.mxu0 %v150
  %536 = vmatprep.subr.mxu0 0.0
  %537 = vmatpush1.msra.mxu0 0.0
  %538 = vmatprep.subr.mxu0 0.0
  %539 = vmatpush1.msra.mxu0 0.0
  %540 = vmatprep.subr.mxu0 0.0
  %541 = vmatpush1.msra.mxu0 0.0
  %542 = vmatprep.subr.mxu0 0.0
  %543 = vmatpush1.msra.mxu0 0.0
  %544 = vmatprep.subr.mxu0 0.0
  %545 = vmatpush1.msra.mxu0 0.0
  %546 = vmatprep.subr.mxu0 0.0
  %547 = vmatpush1.msra.mxu0 0.0
  %548 = vmatprep.subr.mxu0 0.0
  %549 = vmatpush1.msra.mxu0 0.0
  %550 = vmatprep.subr.mxu0 0.0
  %551 = vmatpush1.msra.mxu0 0.0
  %552 = vmatprep.subr.mxu0 0.0
  %553 = vmatpush1.msra.mxu0 0.0
  %554 = vmatprep.subr.mxu0 0.0
  %555 = vmatpush1.msra.mxu0 0.0
  %556 = vmatprep.subr.mxu0 0.0
  %557 = vmatpush1.msra.mxu0 0.0
  %558 = vmatprep.subr.mxu0 0.0
  %559 = vmatpush1.msra.mxu0 0.0
  %560 = vmatprep.subr.mxu0 0.0
  %561 = vmatpush1.msra.mxu0 0.0
  %562 = vmatprep.subr.mxu0 0.0
  %563 = vmatpush1.msra.mxu0 0.0
  %564 = vmatprep.subr.mxu0 0.0
  %565 = vmatpush1.msra.mxu0 0.0
  %566 = vmatprep.subr.mxu0 0.0
  %567 = vmatpush1.msra.mxu0 0.0
  %568 = vmatprep.subr.mxu0 0.0
  %569 = vmatpush1.msra.mxu0 0.0
  %570 = vmatprep.subr.mxu0 0.0
  %571 = vmatpush1.msra.mxu0 0.0
  %572 = vmatprep.subr.mxu0 0.0
  %573 = vmatpush1.msra.mxu0 0.0
  %574 = vmatprep.subr.mxu0 0.0
  %575 = vmatpush1.msra.mxu0 0.0
  %576 = vmatprep.subr.mxu0 0.0
  %577 = vmatpush1.msra.mxu0 0.0
  %578 = vmatprep.subr.mxu0 0.0
  %579 = vmatpush1.msra.mxu0 0.0
  %580 = vmatprep.subr.mxu0 0.0
  %581 = vmatpush1.msra.mxu0 0.0
  %582 = vmatprep.subr.mxu0 0.0
  %583 = vmatpush1.msra.mxu0 0.0
  %584 = vmatprep.mubr.f32.mxu0 0.0
  %585 = vmatmul.mubr.f32.gmra.mrb[0].mxu0 %v518
  %v586 = vpop.f32.mrb[0].mxu0
  %v587 = vadd.f32 0.0, %v586
  %v588 = vpop.f32.mrb[0].mxu0
  %v589 = vadd.f32 0.0, %v588
  %590 = vdwg.mxu0
  %v593 = vrot.slane %v587, 5
  %v594 = vrot.slane %v589, 5
  %v597 = vadd.f32 %v132, %v593
  %v598 = vadd.f32 %v134, %v594
  %v599 = vxor.u32 %v597, 2147483648
  %v600 = vxor.u32 %v598, 2147483648
  %v601 = vmul.f32 %v599, 1.442695
  %v602 = vpow.pop %v601
  %v603 = vmul.f32 %v600, 1.442695
  %v604 = vpow.pop %v603
  %v605 = vadd.f32 %v602, 1.0
  %v606 = vadd.f32 %v604, 1.0
  %v607 = vrcp.pop %v605
  %v608 = vmul.f32 1.0, %v607
  %v609 = vrcp.pop %v606
  %v610 = vmul.f32 1.0, %v609
  %v611 = vtanh.pop %v598
  %v613 = vrot.slane %v502, 7
  %v615 = vmul.f32 %v608, %v613
  %617 = vrot.lane.b32.xlu0 %v611, 64
  %v618 = vpop.permute.xlu0 %617
  %v620 = vmul.f32 %v608, %v618
  %622 = vrot.lane.b32.xlu0 %v620, 64
  %v623 = vpop.permute.xlu0 %622
  %v625 = vadd.f32 %v615, %v623
  %v626 = vtanh.pop %v625
  %628 = vrot.lane.b32.xlu0 %v626, 64
  %v629 = vpop.permute.xlu0 %628
  %v631 = vmul.f32 %v610, %v629
  %vm632 = vcmask 519171
  %633 = vst.msk [vmem:[#allocation2] sm:$0x8] %vm632, %v631
  %635 = vrot.lane.b32.xlu0 %v631, 64
  %v636 = vpop.permute.xlu0 %635
  %vm638 = vcmask 1043971
  %639 = vst.msk [vmem:[#allocation2 + $0x1] sm:$0x8] %vm638, %v636
  %v640 = vrot.slane %v631, 3
  %v641 = vsel %vm61, %v640, 0
  %643 = vmatprep.subr.mxu0 %v137
  %644 = vmatpush1.msra.mxu0 %v136
  %645 = vmatprep.subr.mxu0 %v139
  %646 = vmatpush1.msra.mxu0 %v138
  %647 = vmatprep.subr.mxu0 %v141
  %648 = vmatpush1.msra.mxu0 %v140
  %649 = vmatprep.subr.mxu0 %v143
  %650 = vmatpush1.msra.mxu0 %v142
  %651 = vmatprep.subr.mxu0 %v145
  %652 = vmatpush1.msra.mxu0 %v144
  %653 = vmatprep.subr.mxu0 %v147
  %654 = vmatpush1.msra.mxu0 %v146
  %655 = vmatprep.subr.mxu0 %v149
  %656 = vmatpush1.msra.mxu0 %v148
  %657 = vmatprep.subr.mxu0 %v151
  %658 = vmatpush1.msra.mxu0 %v150
  %659 = vmatprep.subr.mxu0 0.0
  %660 = vmatpush1.msra.mxu0 0.0
  %661 = vmatprep.subr.mxu0 0.0
  %662 = vmatpush1.msra.mxu0 0.0
  %663 = vmatprep.subr.mxu0 0.0
  %664 = vmatpush1.msra.mxu0 0.0
  %665 = vmatprep.subr.mxu0 0.0
  %666 = vmatpush1.msra.mxu0 0.0
  %667 = vmatprep.subr.mxu0 0.0
  %668 = vmatpush1.msra.mxu0 0.0
  %669 = vmatprep.subr.mxu0 0.0
  %670 = vmatpush1.msra.mxu0 0.0
  %671 = vmatprep.subr.mxu0 0.0
  %672 = vmatpush1.msra.mxu0 0.0
  %673 = vmatprep.subr.mxu0 0.0
  %674 = vmatpush1.msra.mxu0 0.0
  %675 = vmatprep.subr.mxu0 0.0
  %676 = vmatpush1.msra.mxu0 0.0
  %677 = vmatprep.subr.mxu0 0.0
  %678 = vmatpush1.msra.mxu0 0.0
  %679 = vmatprep.subr.mxu0 0.0
  %680 = vmatpush1.msra.mxu0 0.0
  %681 = vmatprep.subr.mxu0 0.0
  %682 = vmatpush1.msra.mxu0 0.0
  %683 = vmatprep.subr.mxu0 0.0
  %684 = vmatpush1.msra.mxu0 0.0
  %685 = vmatprep.subr.mxu0 0.0
  %686 = vmatpush1.msra.mxu0 0.0
  %687 = vmatprep.subr.mxu0 0.0
  %688 = vmatpush1.msra.mxu0 0.0
  %689 = vmatprep.subr.mxu0 0.0
  %690 = vmatpush1.msra.mxu0 0.0
  %691 = vmatprep.subr.mxu0 0.0
  %692 = vmatpush1.msra.mxu0 0.0
  %693 = vmatprep.subr.mxu0 0.0
  %694 = vmatpush1.msra.mxu0 0.0
  %695 = vmatprep.subr.mxu0 0.0
  %696 = vmatpush1.msra.mxu0 0.0
  %697 = vmatprep.subr.mxu0 0.0
  %698 = vmatpush1.msra.mxu0 0.0
  %699 = vmatprep.subr.mxu0 0.0
  %700 = vmatpush1.msra.mxu0 0.0
  %701 = vmatprep.subr.mxu0 0.0
  %702 = vmatpush1.msra.mxu0 0.0
  %703 = vmatprep.subr.mxu0 0.0
  %704 = vmatpush1.msra.mxu0 0.0
  %705 = vmatprep.subr.mxu0 0.0
  %706 = vmatpush1.msra.mxu0 0.0
  %707 = vmatprep.mubr.f32.mxu0 0.0
  %708 = vmatmul.mubr.f32.gmra.mrb[0].mxu0 %v641
  %v709 = vpop.f32.mrb[0].mxu0
  %v710 = vadd.f32 0.0, %v709
  %v711 = vpop.f32.mrb[0].mxu0
  %v712 = vadd.f32 0.0, %v711
  %713 = vdwg.mxu0
  %v716 = vrot.slane %v710, 4
  %v717 = vrot.slane %v712, 4
  %v720 = vadd.f32 %v132, %v716
  %v721 = vadd.f32 %v134, %v717
  %v722 = vxor.u32 %v720, 2147483648
  %v723 = vxor.u32 %v721, 2147483648
  %v724 = vmul.f32 %v722, 1.442695
  %v725 = vpow.pop %v724
  %v726 = vmul.f32 %v723, 1.442695
  %v727 = vpow.pop %v726
  %v728 = vadd.f32 %v725, 1.0
  %v729 = vadd.f32 %v727, 1.0
  %v730 = vrcp.pop %v728
  %v731 = vmul.f32 1.0, %v730
  %v732 = vrcp.pop %v729
  %v733 = vmul.f32 1.0, %v732
  %v734 = vtanh.pop %v721
  %v736 = vrot.slane %v625, 7
  %v738 = vmul.f32 %v731, %v736
  %740 = vrot.lane.b32.xlu0 %v734, 64
  %v741 = vpop.permute.xlu0 %740
  %v743 = vmul.f32 %v731, %v741
  %745 = vrot.lane.b32.xlu0 %v743, 64
  %v746 = vpop.permute.xlu0 %745
  %v748 = vadd.f32 %v738, %v746
  %v749 = vtanh.pop %v748
  %751 = vrot.lane.b32.xlu0 %v749, 64
  %v752 = vpop.permute.xlu0 %751
  %v754 = vmul.f32 %v733, %v752
  %vm755 = vcmask 520196
  %756 = vst.msk [vmem:[#allocation2] sm:$0x10] %vm755, %v754
  %758 = vrot.lane.b32.xlu0 %v754, 64
  %v759 = vpop.permute.xlu0 %758
  %vm761 = vcmask 1044996
  %762 = vst.msk [vmem:[#allocation2 - $0x1] sm:$0x10] %vm761, %v759
  %v763 = vrot.slane %v754, 4
  %v764 = vsel %vm61, %v763, 0
  %766 = vmatprep.subr.mxu0 %v137
  %767 = vmatpush1.msra.mxu0 %v136
  %768 = vmatprep.subr.mxu0 %v139
  %769 = vmatpush1.msra.mxu0 %v138
  %770 = vmatprep.subr.mxu0 %v141
  %771 = vmatpush1.msra.mxu0 %v140
  %772 = vmatprep.subr.mxu0 %v143
  %773 = vmatpush1.msra.mxu0 %v142
  %774 = vmatprep.subr.mxu0 %v145
  %775 = vmatpush1.msra.mxu0 %v144
  %776 = vmatprep.subr.mxu0 %v147
  %777 = vmatpush1.msra.mxu0 %v146
  %778 = vmatprep.subr.mxu0 %v149
  %779 = vmatpush1.msra.mxu0 %v148
  %780 = vmatprep.subr.mxu0 %v151
  %781 = vmatpush1.msra.mxu0 %v150
  %782 = vmatprep.subr.mxu0 0.0
  %783 = vmatpush1.msra.mxu0 0.0
  %784 = vmatprep.subr.mxu0 0.0
  %785 = vmatpush1.msra.mxu0 0.0
  %786 = vmatprep.subr.mxu0 0.0
  %787 = vmatpush1.msra.mxu0 0.0
  %788 = vmatprep.subr.mxu0 0.0
  %789 = vmatpush1.msra.mxu0 0.0
  %790 = vmatprep.subr.mxu0 0.0
  %791 = vmatpush1.msra.mxu0 0.0
  %792 = vmatprep.subr.mxu0 0.0
  %793 = vmatpush1.msra.mxu0 0.0
  %794 = vmatprep.subr.mxu0 0.0
  %795 = vmatpush1.msra.mxu0 0.0
  %796 = vmatprep.subr.mxu0 0.0
  %797 = vmatpush1.msra.mxu0 0.0
  %798 = vmatprep.subr.mxu0 0.0
  %799 = vmatpush1.msra.mxu0 0.0
  %800 = vmatprep.subr.mxu0 0.0
  %801 = vmatpush1.msra.mxu0 0.0
  %802 = vmatprep.subr.mxu0 0.0
  %803 = vmatpush1.msra.mxu0 0.0
  %804 = vmatprep.subr.mxu0 0.0
  %805 = vmatpush1.msra.mxu0 0.0
  %806 = vmatprep.subr.mxu0 0.0
  %807 = vmatpush1.msra.mxu0 0.0
  %808 = vmatprep.subr.mxu0 0.0
  %809 = vmatpush1.msra.mxu0 0.0
  %810 = vmatprep.subr.mxu0 0.0
  %811 = vmatpush1.msra.mxu0 0.0
  %812 = vmatprep.subr.mxu0 0.0
  %813 = vmatpush1.msra.mxu0 0.0
  %814 = vmatprep.subr.mxu0 0.0
  %815 = vmatpush1.msra.mxu0 0.0
  %816 = vmatprep.subr.mxu0 0.0
  %817 = vmatpush1.msra.mxu0 0.0
  %818 = vmatprep.subr.mxu0 0.0
  %819 = vmatpush1.msra.mxu0 0.0
  %820 = vmatprep.subr.mxu0 0.0
  %821 = vmatpush1.msra.mxu0 0.0
  %822 = vmatprep.subr.mxu0 0.0
  %823 = vmatpush1.msra.mxu0 0.0
  %824 = vmatprep.subr.mxu0 0.0
  %825 = vmatpush1.msra.mxu0 0.0
  %826 = vmatprep.subr.mxu0 0.0
  %827 = vmatpush1.msra.mxu0 0.0
  %828 = vmatprep.subr.mxu0 0.0
  %829 = vmatpush1.msra.mxu0 0.0
  %830 = vmatprep.mubr.f32.mxu0 0.0
  %831 = vmatmul.mubr.f32.gmra.mrb[0].mxu0 %v764
  %v832 = vpop.f32.mrb[0].mxu0
  %v833 = vadd.f32 0.0, %v832
  %v834 = vpop.f32.mrb[0].mxu0
  %v835 = vadd.f32 0.0, %v834
  %836 = vdwg.mxu0
  %v839 = vrot.slane %v833, 3
  %v840 = vrot.slane %v835, 3
  %v843 = vadd.f32 %v132, %v839
  %v844 = vadd.f32 %v134, %v840
  %v845 = vxor.u32 %v843, 2147483648
  %v846 = vxor.u32 %v844, 2147483648
  %v847 = vmul.f32 %v845, 1.442695
  %v848 = vpow.pop %v847
  %v849 = vmul.f32 %v846, 1.442695
  %v850 = vpow.pop %v849
  %v851 = vadd.f32 %v848, 1.0
  %v852 = vadd.f32 %v850, 1.0
  %v853 = vrcp.pop %v851
  %v854 = vmul.f32 1.0, %v853
  %v855 = vrcp.pop %v852
  %v856 = vmul.f32 1.0, %v855
  %v857 = vtanh.pop %v844
  %v859 = vrot.slane %v748, 7
  %v861 = vmul.f32 %v854, %v859
  %863 = vrot.lane.b32.xlu0 %v857, 64
  %v864 = vpop.permute.xlu0 %863
  %v866 = vmul.f32 %v854, %v864
  %868 = vrot.lane.b32.xlu0 %v866, 64
  %v869 = vpop.permute.xlu0 %868
  %v871 = vadd.f32 %v861, %v869
  %v872 = vtanh.pop %v871
  %874 = vrot.lane.b32.xlu0 %v872, 64
  %v875 = vpop.permute.xlu0 %874
  %v877 = vmul.f32 %v856, %v875
  %vm878 = vcmask 521221
  %879 = vst.msk [vmem:[#allocation2] sm:$0x20] %vm878, %v877
  %881 = vrot.lane.b32.xlu0 %v877, 64
  %v882 = vpop.permute.xlu0 %881
  %vm884 = vcmask 1046021
  %885 = vst.msk [vmem:[#allocation2 - $0x3] sm:$0x20] %vm884, %v882
  %v886 = vrot.slane %v877, 5
  %v887 = vsel %vm61, %v886, 0
  %889 = vmatprep.subr.mxu0 %v137
  %890 = vmatpush1.msra.mxu0 %v136
  %891 = vmatprep.subr.mxu0 %v139
  %892 = vmatpush1.msra.mxu0 %v138
  %893 = vmatprep.subr.mxu0 %v141
  %894 = vmatpush1.msra.mxu0 %v140
  %895 = vmatprep.subr.mxu0 %v143
  %896 = vmatpush1.msra.mxu0 %v142
  %897 = vmatprep.subr.mxu0 %v145
  %898 = vmatpush1.msra.mxu0 %v144
  %899 = vmatprep.subr.mxu0 %v147
  %900 = vmatpush1.msra.mxu0 %v146
  %901 = vmatprep.subr.mxu0 %v149
  %902 = vmatpush1.msra.mxu0 %v148
  %903 = vmatprep.subr.mxu0 %v151
  %904 = vmatpush1.msra.mxu0 %v150
  %905 = vmatprep.subr.mxu0 0.0
  %906 = vmatpush1.msra.mxu0 0.0
  %907 = vmatprep.subr.mxu0 0.0
  %908 = vmatpush1.msra.mxu0 0.0
  %909 = vmatprep.subr.mxu0 0.0
  %910 = vmatpush1.msra.mxu0 0.0
  %911 = vmatprep.subr.mxu0 0.0
  %912 = vmatpush1.msra.mxu0 0.0
  %913 = vmatprep.subr.mxu0 0.0
  %914 = vmatpush1.msra.mxu0 0.0
  %915 = vmatprep.subr.mxu0 0.0
  %916 = vmatpush1.msra.mxu0 0.0
  %917 = vmatprep.subr.mxu0 0.0
  %918 = vmatpush1.msra.mxu0 0.0
  %919 = vmatprep.subr.mxu0 0.0
  %920 = vmatpush1.msra.mxu0 0.0
  %921 = vmatprep.subr.mxu0 0.0
  %922 = vmatpush1.msra.mxu0 0.0
  %923 = vmatprep.subr.mxu0 0.0
  %924 = vmatpush1.msra.mxu0 0.0
  %925 = vmatprep.subr.mxu0 0.0
  %926 = vmatpush1.msra.mxu0 0.0
  %927 = vmatprep.subr.mxu0 0.0
  %928 = vmatpush1.msra.mxu0 0.0
  %929 = vmatprep.subr.mxu0 0.0
  %930 = vmatpush1.msra.mxu0 0.0
  %931 = vmatprep.subr.mxu0 0.0
  %932 = vmatpush1.msra.mxu0 0.0
  %933 = vmatprep.subr.mxu0 0.0
  %934 = vmatpush1.msra.mxu0 0.0
  %935 = vmatprep.subr.mxu0 0.0
  %936 = vmatpush1.msra.mxu0 0.0
  %937 = vmatprep.subr.mxu0 0.0
  %938 = vmatpush1.msra.mxu0 0.0
  %939 = vmatprep.subr.mxu0 0.0
  %940 = vmatpush1.msra.mxu0 0.0
  %941 = vmatprep.subr.mxu0 0.0
  %942 = vmatpush1.msra.mxu0 0.0
  %943 = vmatprep.subr.mxu0 0.0
  %944 = vmatpush1.msra.mxu0 0.0
  %945 = vmatprep.subr.mxu0 0.0
  %946 = vmatpush1.msra.mxu0 0.0
  %947 = vmatprep.subr.mxu0 0.0
  %948 = vmatpush1.msra.mxu0 0.0
  %949 = vmatprep.subr.mxu0 0.0
  %950 = vmatpush1.msra.mxu0 0.0
  %951 = vmatprep.subr.mxu0 0.0
  %952 = vmatpush1.msra.mxu0 0.0
  %953 = vmatprep.mubr.f32.mxu0 0.0
  %954 = vmatmul.mubr.f32.gmra.mrb[0].mxu0 %v887
  %v955 = vpop.f32.mrb[0].mxu0
  %v956 = vadd.f32 0.0, %v955
  %v957 = vpop.f32.mrb[0].mxu0
  %v958 = vadd.f32 0.0, %v957
  %959 = vdwg.mxu0
  %v962 = vrot.slane %v956, 2
  %v963 = vrot.slane %v958, 2
  %v966 = vadd.f32 %v132, %v962
  %v967 = vadd.f32 %v134, %v963
  %v968 = vxor.u32 %v966, 2147483648
  %v969 = vxor.u32 %v967, 2147483648
  %v970 = vmul.f32 %v968, 1.442695
  %v971 = vpow.pop %v970
  %v972 = vmul.f32 %v969, 1.442695
  %v973 = vpow.pop %v972
  %v974 = vadd.f32 %v971, 1.0
  %v975 = vadd.f32 %v973, 1.0
  %v976 = vrcp.pop %v974
  %v977 = vmul.f32 1.0, %v976
  %v978 = vrcp.pop %v975
  %v979 = vmul.f32 1.0, %v978
  %v980 = vtanh.pop %v967
  %v982 = vrot.slane %v871, 7
  %v984 = vmul.f32 %v977, %v982
  %986 = vrot.lane.b32.xlu0 %v980, 64
  %v987 = vpop.permute.xlu0 %986
  %v989 = vmul.f32 %v977, %v987
  %991 = vrot.lane.b32.xlu0 %v989, 64
  %v992 = vpop.permute.xlu0 %991
  %v994 = vadd.f32 %v984, %v992
  %v995 = vtanh.pop %v994
  %997 = vrot.lane.b32.xlu0 %v995, 64
  %v998 = vpop.permute.xlu0 %997
  %v1000 = vmul.f32 %v979, %v998
  %vm1001 = vcmask 522246
  %1002 = vst.msk [vmem:[#allocation2] sm:$0x40] %vm1001, %v1000
  %1004 = vrot.lane.b32.xlu0 %v1000, 64
  %v1005 = vpop.permute.xlu0 %1004
  %vm1007 = vcmask 1047046
  %1008 = vst.msk [vmem:[#allocation2 - $0x5] sm:$0x40] %vm1007, %v1005
  %v1009 = vrot.slane %v1000, 6
  %v1010 = vsel %vm61, %v1009, 0
  %1012 = vmatprep.subr.mxu0 %v137
  %1013 = vmatpush1.msra.mxu0 %v136
  %1014 = vmatprep.subr.mxu0 %v139
  %1015 = vmatpush1.msra.mxu0 %v138
  %1016 = vmatprep.subr.mxu0 %v141
  %1017 = vmatpush1.msra.mxu0 %v140
  %1018 = vmatprep.subr.mxu0 %v143
  %1019 = vmatpush1.msra.mxu0 %v142
  %1020 = vmatprep.subr.mxu0 %v145
  %1021 = vmatpush1.msra.mxu0 %v144
  %1022 = vmatprep.subr.mxu0 %v147
  %1023 = vmatpush1.msra.mxu0 %v146
  %1024 = vmatprep.subr.mxu0 %v149
  %1025 = vmatpush1.msra.mxu0 %v148
  %1026 = vmatprep.subr.mxu0 %v151
  %1027 = vmatpush1.msra.mxu0 %v150
  %1028 = vmatprep.subr.mxu0 0.0
  %1029 = vmatpush1.msra.mxu0 0.0
  %1030 = vmatprep.subr.mxu0 0.0
  %1031 = vmatpush1.msra.mxu0 0.0
  %1032 = vmatprep.subr.mxu0 0.0
  %1033 = vmatpush1.msra.mxu0 0.0
  %1034 = vmatprep.subr.mxu0 0.0
  %1035 = vmatpush1.msra.mxu0 0.0
  %1036 = vmatprep.subr.mxu0 0.0
  %1037 = vmatpush1.msra.mxu0 0.0
  %1038 = vmatprep.subr.mxu0 0.0
  %1039 = vmatpush1.msra.mxu0 0.0
  %1040 = vmatprep.subr.mxu0 0.0
  %1041 = vmatpush1.msra.mxu0 0.0
  %1042 = vmatprep.subr.mxu0 0.0
  %1043 = vmatpush1.msra.mxu0 0.0
  %1044 = vmatprep.subr.mxu0 0.0
  %1045 = vmatpush1.msra.mxu0 0.0
  %1046 = vmatprep.subr.mxu0 0.0
  %1047 = vmatpush1.msra.mxu0 0.0
  %1048 = vmatprep.subr.mxu0 0.0
  %1049 = vmatpush1.msra.mxu0 0.0
  %1050 = vmatprep.subr.mxu0 0.0
  %1051 = vmatpush1.msra.mxu0 0.0
  %1052 = vmatprep.subr.mxu0 0.0
  %1053 = vmatpush1.msra.mxu0 0.0
  %1054 = vmatprep.subr.mxu0 0.0
  %1055 = vmatpush1.msra.mxu0 0.0
  %1056 = vmatprep.subr.mxu0 0.0
  %1057 = vmatpush1.msra.mxu0 0.0
  %1058 = vmatprep.subr.mxu0 0.0
  %1059 = vmatpush1.msra.mxu0 0.0
  %1060 = vmatprep.subr.mxu0 0.0
  %1061 = vmatpush1.msra.mxu0 0.0
  %1062 = vmatprep.subr.mxu0 0.0
  %1063 = vmatpush1.msra.mxu0 0.0
  %1064 = vmatprep.subr.mxu0 0.0
  %1065 = vmatpush1.msra.mxu0 0.0
  %1066 = vmatprep.subr.mxu0 0.0
  %1067 = vmatpush1.msra.mxu0 0.0
  %1068 = vmatprep.subr.mxu0 0.0
  %1069 = vmatpush1.msra.mxu0 0.0
  %1070 = vmatprep.subr.mxu0 0.0
  %1071 = vmatpush1.msra.mxu0 0.0
  %1072 = vmatprep.subr.mxu0 0.0
  %1073 = vmatpush1.msra.mxu0 0.0
  %1074 = vmatprep.subr.mxu0 0.0
  %1075 = vmatpush1.msra.mxu0 0.0
  %1076 = vmatprep.mubr.f32.mxu0 0.0
  %1077 = vmatmul.mubr.f32.gmra.mrb[0].mxu0 %v1010
  %v1078 = vpop.f32.mrb[0].mxu0
  %v1079 = vadd.f32 0.0, %v1078
  %v1080 = vpop.f32.mrb[0].mxu0
  %v1081 = vadd.f32 0.0, %v1080
  %1082 = vdwg.mxu0
  %v1085 = vrot.slane %v1079, 1
  %v1086 = vrot.slane %v1081, 1
  %v1089 = vadd.f32 %v132, %v1085
  %v1090 = vadd.f32 %v134, %v1086
  %v1091 = vxor.u32 %v1089, 2147483648
  %v1092 = vxor.u32 %v1090, 2147483648
  %v1093 = vmul.f32 %v1091, 1.442695
  %v1094 = vpow.pop %v1093
  %v1095 = vmul.f32 %v1092, 1.442695
  %v1096 = vpow.pop %v1095
  %v1097 = vadd.f32 %v1094, 1.0
  %v1098 = vadd.f32 %v1096, 1.0
  %v1099 = vrcp.pop %v1097
  %v1100 = vmul.f32 1.0, %v1099
  %v1101 = vrcp.pop %v1098
  %v1102 = vmul.f32 1.0, %v1101
  %v1103 = vtanh.pop %v1090
  %v1105 = vrot.slane %v994, 7
  %v1107 = vmul.f32 %v1100, %v1105
  %1109 = vrot.lane.b32.xlu0 %v1103, 64
  %v1110 = vpop.permute.xlu0 %1109
  %v1112 = vmul.f32 %v1100, %v1110
  %1114 = vrot.lane.b32.xlu0 %v1112, 64
  %v1115 = vpop.permute.xlu0 %1114
  %v1117 = vadd.f32 %v1107, %v1115
  %v1118 = vtanh.pop %v1117
  %1120 = vrot.lane.b32.xlu0 %v1118, 64
  %v1121 = vpop.permute.xlu0 %1120
  %v1123 = vmul.f32 %v1102, %v1121
  %vm1124 = vcmask 523271
  %1125 = vst.msk [vmem:[#allocation2] sm:$0x80] %vm1124, %v1123
  %1127 = vrot.lane.b32.xlu0 %v1123, 64
  %v1128 = vpop.permute.xlu0 %1127
  %vm1130 = vcmask 1048071
  %1131 = vst.msk [vmem:[#allocation2 - $0x7] sm:$0x80] %vm1130, %v1128
  %v1132 = vld [vmem:[#allocation2] sm:$0xff]
  %v1133 = vld [vmem:[%s4] sm:$0xff]
  %v1134 = vld [vmem:[%s4 + $0x8] sm:$0xff]
  %v1135 = vld [vmem:[%s4 + $0x10] sm:$0xff]
  %v1136 = vld [vmem:[%s4 + $0x18] sm:$0xff]
  %v1137 = vld [vmem:[%s4 + $0x20] sm:$0xff]
  %v1138 = vld [vmem:[%s4 + $0x28] sm:$0xff]
  %v1139 = vld [vmem:[%s4 + $0x30] sm:$0xff]
  %v1140 = vld [vmem:[%s4 + $0x38] sm:$0xff]
  %v1141 = vld [vmem:[%s4 + $0x40] sm:$0xff]
  %v1142 = vld [vmem:[%s4 + $0x48] sm:$0xff]
  %v1143 = vld [vmem:[%s4 + $0x50] sm:$0xff]
  %v1144 = vld [vmem:[%s4 + $0x58] sm:$0xff]
  %v1145 = vld [vmem:[%s4 + $0x60] sm:$0xff]
  %v1146 = vld [vmem:[%s4 + $0x68] sm:$0xff]
  %v1147 = vld [vmem:[%s4 + $0x70] sm:$0xff]
  %v1148 = vld [vmem:[%s4 + $0x78] sm:$0xff]
  %v1149 = vld [vmem:[%s5] sm:$0x1]
  %v1151 = vlaneseq
  %v1152 = vshrl.u32 %v1151, 7
  %v1153 = vsub.s32 0, %v1152
  %v1154 = vrot.slane %v1149, %v1153
  %1156 = vmatprep.subr.mxu0 0.0
  %1157 = vmatpush1.msra.mxu0 %v1133
  %1158 = vmatprep.subr.mxu0 0.0
  %1159 = vmatpush1.msra.mxu0 %v1134
  %1160 = vmatprep.subr.mxu0 0.0
  %1161 = vmatpush1.msra.mxu0 %v1135
  %1162 = vmatprep.subr.mxu0 0.0
  %1163 = vmatpush1.msra.mxu0 %v1136
  %1164 = vmatprep.subr.mxu0 0.0
  %1165 = vmatpush1.msra.mxu0 %v1137
  %1166 = vmatprep.subr.mxu0 0.0
  %1167 = vmatpush1.msra.mxu0 %v1138
  %1168 = vmatprep.subr.mxu0 0.0
  %1169 = vmatpush1.msra.mxu0 %v1139
  %1170 = vmatprep.subr.mxu0 0.0
  %1171 = vmatpush1.msra.mxu0 %v1140
  %1172 = vmatprep.subr.mxu0 0.0
  %1173 = vmatpush1.msra.mxu0 %v1141
  %1174 = vmatprep.subr.mxu0 0.0
  %1175 = vmatpush1.msra.mxu0 %v1142
  %1176 = vmatprep.subr.mxu0 0.0
  %1177 = vmatpush1.msra.mxu0 %v1143
  %1178 = vmatprep.subr.mxu0 0.0
  %1179 = vmatpush1.msra.mxu0 %v1144
  %1180 = vmatprep.subr.mxu0 0.0
  %1181 = vmatpush1.msra.mxu0 %v1145
  %1182 = vmatprep.subr.mxu0 0.0
  %1183 = vmatpush1.msra.mxu0 %v1146
  %1184 = vmatprep.subr.mxu0 0.0
  %1185 = vmatpush1.msra.mxu0 %v1147
  %1186 = vmatprep.subr.mxu0 0.0
  %1187 = vmatpush1.msra.mxu0 %v1148
  %1188 = vmatprep.subr.mxu0 0.0
  %1189 = vmatpush1.msra.mxu0 0.0
  %1190 = vmatprep.subr.mxu0 0.0
  %1191 = vmatpush1.msra.mxu0 0.0
  %1192 = vmatprep.subr.mxu0 0.0
  %1193 = vmatpush1.msra.mxu0 0.0
  %1194 = vmatprep.subr.mxu0 0.0
  %1195 = vmatpush1.msra.mxu0 0.0
  %1196 = vmatprep.subr.mxu0 0.0
  %1197 = vmatpush1.msra.mxu0 0.0
  %1198 = vmatprep.subr.mxu0 0.0
  %1199 = vmatpush1.msra.mxu0 0.0
  %1200 = vmatprep.subr.mxu0 0.0
  %1201 = vmatpush1.msra.mxu0 0.0
  %1202 = vmatprep.subr.mxu0 0.0
  %1203 = vmatpush1.msra.mxu0 0.0
  %1204 = vmatprep.subr.mxu0 0.0
  %1205 = vmatpush1.msra.mxu0 0.0
  %1206 = vmatprep.subr.mxu0 0.0
  %1207 = vmatpush1.msra.mxu0 0.0
  %1208 = vmatprep.subr.mxu0 0.0
  %1209 = vmatpush1.msra.mxu0 0.0
  %1210 = vmatprep.subr.mxu0 0.0
  %1211 = vmatpush1.msra.mxu0 0.0
  %1212 = vmatprep.subr.mxu0 0.0
  %1213 = vmatpush1.msra.mxu0 0.0
  %1214 = vmatprep.subr.mxu0 0.0
  %1215 = vmatpush1.msra.mxu0 0.0
  %1216 = vmatprep.subr.mxu0 0.0
  %1217 = vmatpush1.msra.mxu0 0.0
  %1218 = vmatprep.subr.mxu0 0.0
  %1219 = vmatpush1.msra.mxu0 0.0
  %1220 = vmatprep.mubr.f32.mxu0 0.0
  %1221 = vmatmul.mubr.f32.gmra.mrb[0].mxu0 %v1132
  %v1222 = vpop.f32.mrb[0].mxu0
  %v1223 = vadd.f32 %v1154, %v1222
  %v1224 = vpop.f32.mrb[0].mxu0
  %1225 = vdwg.mxu0
  %v1226 = vld [vmem:[%s6] sm:$0xff]
  %s1227 = scalar_lea.vmem %s6, 8
  %v1228 = vld [vmem:[%s1227] sm:$0xff]
  %v1229 = vlaneseq
  %v1230 = vshrl.u32 %v1229, 7
  %v1231 = vlaneseq
  %v1232 = vand.u32 %v1231, 127
  %vm1233 = vcmp.eq.s32.totalorder %v1230, %v1232
  %v1234 = vlaneseq
  %v1235 = vshrl.u32 %v1234, 7
  %v1236 = vsub.s32 1, %v1235
  %v1237 = vrot.slane %v1223, %v1236
  %v1238 = vsel %vm1233, %v1237, 0.0
  %vm1239 = vcmask 64512
  %v1240 = vsel %vm1239, %v1238, 0.0
  %1241 = vadd.xlane.f32.xlu0 %v1240
  %v1242 = vpop.xlane.xlu0 %1241
  %v1243 = vlaneseq
  %v1244 = vshrl.u32 %v1243, 7
  %v1245 = vsub.s32 3, %v1244
  %v1246 = vrot.slane %v1223, %v1245
  %v1247 = vsel %vm1233, %v1246, 0.0
  %v1248 = vsel %vm1239, %v1247, 0.0
  %1249 = vadd.xlane.f32.xlu0 %v1248
  %v1250 = vpop.xlane.xlu0 %1249
  %v1251 = vlaneseq
  %v1252 = vshrl.u32 %v1251, 7
  %v1253 = vsub.s32 5, %v1252
  %v1254 = vrot.slane %v1223, %v1253
  %v1255 = vsel %vm1233, %v1254, 0.0
  %v1256 = vsel %vm1239, %v1255, 0.0
  %1257 = vadd.xlane.f32.xlu0 %v1256
  %v1258 = vpop.xlane.xlu0 %1257
  %v1259 = vlaneseq
  %v1260 = vshrl.u32 %v1259, 7
  %v1261 = vsub.s32 7, %v1260
  %v1262 = vrot.slane %v1223, %v1261
  %v1263 = vsel %vm1233, %v1262, 0.0
  %v1264 = vsel %vm1239, %v1263, 0.0
  %1265 = vadd.xlane.f32.xlu0 %v1264
  %v1266 = vpop.xlane.xlu0 %1265
  %vm1267 = vcmp.eq.s32.totalorder %v1230, 6
  %v1268 = vsel %vm1267, 0.0, -10000.0
  %v1269 = vadd.f32 %v1268, %v1226
  %v1270 = vsel %vm1239, %v1269, -inf
  %v1271 = vrot.slane %v1270, 4
  %v1272 = vmax.f32 %v1270, %v1271
  %v1273 = vrot.slane %v1272, 2
  %v1274 = vmax.f32 %v1272, %v1273
  %v1275 = vrot.slane %v1274, 1
  %v1276 = vmax.f32 %v1274, %v1275
  %vm1277 = vcmp.eq.f32.partialorder %v1269, %v1276
  %v1278 = vsel %vm1277, %v1230, 8
  %v1279 = vsel %vm1239, %v1278, 2147483647
  %v1280 = vrot.slane %v1279, 4
  %vm1281 = vcmp.lt.s32.totalorder %v1279, %v1280
  %v1282 = vsel %vm1281, %v1279, %v1280
  %v1283 = vrot.slane %v1282, 2
  %vm1284 = vcmp.lt.s32.totalorder %v1282, %v1283
  %v1285 = vsel %vm1284, %v1282, %v1283
  %v1286 = vrot.slane %v1285, 1
  %vm1287 = vcmp.lt.s32.totalorder %v1285, %v1286
  %v1288 = vsel %vm1287, %v1285, %v1286
  %v1289 = vadd.f32 %v1276, %v1223
  %v1290 = vlaneseq
  %v1291 = vshrl.u32 %v1290, 7
  %v1292 = vsub.s32 0, %v1291
  %v1293 = vrot.slane %v1289, %v1292
  %v1294 = vadd.f32 %v1293, %v1228
  %v1295 = vsel %vm1239, %v1294, -inf
  %1296 = vmax.xlane.f32.xlu0 %v1295
  %v1297 = vpop.xlane.xlu0 %1296
  %vm1298 = vcmp.eq.f32.partialorder %v1294, %v1297
  %v1299 = vsel %vm1298, %v1232, 8
  %v1300 = vsel %vm1239, %v1299, 2147483647
  %v1301 = vand.u32 %v1300, 65535
  %v1302 = vshra.s32 %v1300, 16
  %v1303 = vcvt.s32.f32 %v1301
  %v1304 = vcvt.s32.f32 %v1302
  %1305 = vmin.xlane.f32.xlu0 %v1304
  %v1306 = vpop.xlane.xlu0 %1305
  %vm1307 = vcmp.eq.f32.partialorder %v1304, %v1306
  %v1308 = vsel %vm1307, %v1303, inf
  %1309 = vmin.xlane.f32.xlu0 %v1308
  %v1310 = vpop.xlane.xlu0 %1309
  %v1311 = vcvt.f32.s32 %v1310
  %v1312 = vcvt.f32.s32 %v1306
  %v1313 = vshll.u32 %v1312, 16
  %v1314 = vadd.s32 %v1313, %v1311
  %v1315 = vadd.f32 %v1297, %v1242
  %v1316 = vadd.f32 %v1315, %v1226
  %v1317 = vsel %vm1239, %v1316, -inf
  %v1318 = vrot.slane %v1317, 4
  %v1319 = vmax.f32 %v1317, %v1318
  %v1320 = vrot.slane %v1319, 2
  %v1321 = vmax.f32 %v1319, %v1320
  %v1322 = vrot.slane %v1321, 1
  %v1323 = vmax.f32 %v1321, %v1322
  %vm1324 = vcmp.eq.f32.partialorder %v1316, %v1323
  %v1325 = vsel %vm1324, %v1230, 8
  %v1326 = vsel %vm1239, %v1325, 2147483647
  %v1327 = vrot.slane %v1326, 4
  %vm1328 = vcmp.lt.s32.totalorder %v1326, %v1327
  %v1329 = vsel %vm1328, %v1326, %v1327
  %v1330 = vrot.slane %v1329, 2
  %vm1331 = vcmp.lt.s32.totalorder %v1329, %v1330
  %v1332 = vsel %vm1331, %v1329, %v1330
  %v1333 = vrot.slane %v1332, 1
  %vm1334 = vcmp.lt.s32.totalorder %v1332, %v1333
  %v1335 = vsel %vm1334, %v1332, %v1333
  %v1336 = vadd.f32 %v1323, %v1223
  %v1337 = vlaneseq
  %v1338 = vshrl.u32 %v1337, 7
  %v1339 = vsub.s32 2, %v1338
  %v1340 = vrot.slane %v1336, %v1339
  %v1341 = vadd.f32 %v1340, %v1228
  %v1342 = vsel %vm1239, %v1341, -inf
  %1343 = vmax.xlane.f32.xlu0 %v1342
  %v1344 = vpop.xlane.xlu0 %1343
  %vm1345 = vcmp.eq.f32.partialorder %v1341, %v1344
  %v1346 = vsel %vm1345, %v1232, 8
  %v1347 = vsel %vm1239, %v1346, 2147483647
  %v1348 = vand.u32 %v1347, 65535
  %v1349 = vshra.s32 %v1347, 16
  %v1350 = vcvt.s32.f32 %v1348
  %v1351 = vcvt.s32.f32 %v1349
  %1352 = vmin.xlane.f32.xlu0 %v1351
  %v1353 = vpop.xlane.xlu0 %1352
  %vm1354 = vcmp.eq.f32.partialorder %v1351, %v1353
  %v1355 = vsel %vm1354, %v1350, inf
  %1356 = vmin.xlane.f32.xlu0 %v1355
  %v1357 = vpop.xlane.xlu0 %1356
  %v1358 = vcvt.f32.s32 %v1357
  %v1359 = vcvt.f32.s32 %v1353
  %v1360 = vshll.u32 %v1359, 16
  %v1361 = vadd.s32 %v1360, %v1358
  %v1362 = vadd.f32 %v1344, %v1250
  %v1363 = vadd.f32 %v1362, %v1226
  %v1364 = vsel %vm1239, %v1363, -inf
  %v1365 = vrot.slane %v1364, 4
  %v1366 = vmax.f32 %v1364, %v1365
  %v1367 = vrot.slane %v1366, 2
  %v1368 = vmax.f32 %v1366, %v1367
  %v1369 = vrot.slane %v1368, 1
  %v1370 = vmax.f32 %v1368, %v1369
  %vm1371 = vcmp.eq.f32.partialorder %v1363, %v1370
  %v1372 = vsel %vm1371, %v1230, 8
  %v1373 = vsel %vm1239, %v1372, 2147483647
  %v1374 = vrot.slane %v1373, 4
  %vm1375 = vcmp.lt.s32.totalorder %v1373, %v1374
  %v1376 = vsel %vm1375, %v1373, %v1374
  %v1377 = vrot.slane %v1376, 2
  %vm1378 = vcmp.lt.s32.totalorder %v1376, %v1377
  %v1379 = vsel %vm1378, %v1376, %v1377
  %v1380 = vrot.slane %v1379, 1
  %vm1381 = vcmp.lt.s32.totalorder %v1379, %v1380
  %v1382 = vsel %vm1381, %v1379, %v1380
  %v1383 = vadd.f32 %v1370, %v1223
  %v1384 = vlaneseq
  %v1385 = vshrl.u32 %v1384, 7
  %v1386 = vsub.s32 4, %v1385
  %v1387 = vrot.slane %v1383, %v1386
  %v1388 = vadd.f32 %v1387, %v1228
  %v1389 = vsel %vm1239, %v1388, -inf
  %1390 = vmax.xlane.f32.xlu0 %v1389
  %v1391 = vpop.xlane.xlu0 %1390
  %vm1392 = vcmp.eq.f32.partialorder %v1388, %v1391
  %v1393 = vsel %vm1392, %v1232, 8
  %v1394 = vsel %vm1239, %v1393, 2147483647
  %v1395 = vand.u32 %v1394, 65535
  %v1396 = vshra.s32 %v1394, 16
  %v1397 = vcvt.s32.f32 %v1395
  %v1398 = vcvt.s32.f32 %v1396
  %1399 = vmin.xlane.f32.xlu0 %v1398
  %v1400 = vpop.xlane.xlu0 %1399
  %vm1401 = vcmp.eq.f32.partialorder %v1398, %v1400
  %v1402 = vsel %vm1401, %v1397, inf
  %1403 = vmin.xlane.f32.xlu0 %v1402
  %v1404 = vpop.xlane.xlu0 %1403
  %v1405 = vcvt.f32.s32 %v1404
  %v1406 = vcvt.f32.s32 %v1400
  %v1407 = vshll.u32 %v1406, 16
  %v1408 = vadd.s32 %v1407, %v1405
  %v1409 = vadd.f32 %v1391, %v1258
  %v1410 = vadd.f32 %v1409, %v1226
  %v1411 = vsel %vm1239, %v1410, -inf
  %v1412 = vrot.slane %v1411, 4
  %v1413 = vmax.f32 %v1411, %v1412
  %v1414 = vrot.slane %v1413, 2
  %v1415 = vmax.f32 %v1413, %v1414
  %v1416 = vrot.slane %v1415, 1
  %v1417 = vmax.f32 %v1415, %v1416
  %vm1418 = vcmp.eq.f32.partialorder %v1410, %v1417
  %v1419 = vsel %vm1418, %v1230, 8
  %v1420 = vsel %vm1239, %v1419, 2147483647
  %v1421 = vrot.slane %v1420, 4
  %vm1422 = vcmp.lt.s32.totalorder %v1420, %v1421
  %v1423 = vsel %vm1422, %v1420, %v1421
  %v1424 = vrot.slane %v1423, 2
  %vm1425 = vcmp.lt.s32.totalorder %v1423, %v1424
  %v1426 = vsel %vm1425, %v1423, %v1424
  %v1427 = vrot.slane %v1426, 1
  %vm1428 = vcmp.lt.s32.totalorder %v1426, %v1427
  %v1429 = vsel %vm1428, %v1426, %v1427
  %v1430 = vadd.f32 %v1417, %v1223
  %v1431 = vlaneseq
  %v1432 = vshrl.u32 %v1431, 7
  %v1433 = vsub.s32 6, %v1432
  %v1434 = vrot.slane %v1430, %v1433
  %v1435 = vadd.f32 %v1434, %v1228
  %v1436 = vsel %vm1239, %v1435, -inf
  %1437 = vmax.xlane.f32.xlu0 %v1436
  %v1438 = vpop.xlane.xlu0 %1437
  %vm1439 = vcmp.eq.f32.partialorder %v1435, %v1438
  %v1440 = vsel %vm1439, %v1232, 8
  %v1441 = vsel %vm1239, %v1440, 2147483647
  %v1442 = vand.u32 %v1441, 65535
  %v1443 = vshra.s32 %v1441, 16
  %v1444 = vcvt.s32.f32 %v1442
  %v1445 = vcvt.s32.f32 %v1443
  %1446 = vmin.xlane.f32.xlu0 %v1445
  %v1447 = vpop.xlane.xlu0 %1446
  %vm1448 = vcmp.eq.f32.partialorder %v1445, %v1447
  %v1449 = vsel %vm1448, %v1444, inf
  %1450 = vmin.xlane.f32.xlu0 %v1449
  %v1451 = vpop.xlane.xlu0 %1450
  %v1452 = vcvt.f32.s32 %v1451
  %v1453 = vcvt.f32.s32 %v1447
  %v1454 = vshll.u32 %v1453, 16
  %v1455 = vadd.s32 %v1454, %v1452
  %v1456 = vadd.f32 %v1438, %v1266
  %vm1457 = vcmask 1040384
  %v1458 = vsel %vm1457, %v1288, %v1335
  %vm1459 = vcmask 1041408
  %v1460 = vsel %vm1459, %v1458, %v1382
  %vm1461 = vcmask 1042432
  %v1462 = vsel %vm1461, %v1460, %v1429
  %vm1463 = vcmask 60416
  %1464 = vst.msk [vmem:[%s8] sm:$0xf] %vm1463, %v1462
  %vm1465 = vcmask 7168
  %v1466 = vsel %vm1465, %v1314, %v1361
  %vm1467 = vcmask 15360
  %v1468 = vsel %vm1467, %v1466, %v1408
  %vm1469 = vcmask 23552
  %v1470 = vsel %vm1469, %v1468, %v1455
  %vm1471 = vcmask 31744
  %1472 = vst.msk [vmem:[%s9] sm:$0xff] %vm1471, %v1470
  %v1473 = vld [vmem:[%s7] sm:$0xff]
  %v1474 = vadd.f32 %v1456, %v1473
  %1475 = vst.msk [vmem:[%s10] sm:$0xff] %vm1465, %v1474
  // Predicated region
  $region34: #{bilstm_crf_forward.1} parent=0 // pred_check
    _
  $region35: #{bilstm_crf_forward.1} parent=0 // pred_check_branch
    %1477 = sbr.rel (0) target = $region37
  $region36: #{bilstm_crf_forward.1} parent=0 // pred_region
    _
  $region37: #{bilstm_crf_forward.1} parent=0 // pred_fallthru
    _
  // Predicated region
  $region38: #{bilstm_crf_forward.1} parent=0 // pred_check
    _
  $region39: #{bilstm_crf_forward.1} parent=0 // pred_check_branch
    %1479 = sbr.rel (0) target = $region41
  $region40: #{bilstm_crf_forward.1} parent=0 // pred_region
    _
  $region41: #{bilstm_crf_forward.1} parent=0 // pred_fallthru
    _
  // Predicated region
  $region42: #{bilstm_crf_forward.1} parent=0 // pred_check
    _
  $region43: #{bilstm_crf_forward.1} parent=0 // pred_check_branch
    %1481 = sbr.rel (0) target = $region45
  $region44: #{bilstm_crf_forward.1} parent=0 // pred_region
    _
  $region45: #{bilstm_crf_forward.1} parent=0 // pred_fallthru
    _
  // Predicated region
  $region46: #{bilstm_crf_forward.1} parent=0 // pred_check
    _
  $region47: #{bilstm_crf_forward.1} parent=0 // pred_check_branch
    %1483 = sbr.rel (0) target = $region49
  $region48: #{bilstm_crf_forward.1} parent=0 // pred_region
    _
  $region49: #{bilstm_crf_forward.1} parent=0 // pred_fallthru
    _
  // Predicated region
  $region50: #{bilstm_crf_forward.1} parent=0 // pred_check
    _
  $region51: #{bilstm_crf_forward.1} parent=0 // pred_check_branch
    %1485 = sbr.rel (0) target = $region53
  $region52: #{bilstm_crf_forward.1} parent=0 // pred_region
    _
  $region53: #{bilstm_crf_forward.1} parent=0 // pred_fallthru
    _
  // Predicated region
  $region54: #{bilstm_crf_forward.1} parent=0 // pred_check
    _
  $region55: #{bilstm_crf_forward.1} parent=0 // pred_check_branch
    %1487 = sbr.rel (0) target = $region57
  $region56: #{bilstm_crf_forward.1} parent=0 // pred_region
    _
  $region57: #{bilstm_crf_forward.1} parent=0 // pred_fallthru
    _

</llo_original>
